<compile_context>
chip_gen: v7x
topology: tpu7x:2x2x1
jax: 0.10.0
libtpu: 0.0.40
codegen_flags: <defaults>
</compile_context>

<pallas_src>
import jax
import jax.numpy as jnp
from jax.experimental import pallas as pl
from jax.experimental.pallas import tpu as pltpu


def _round_up(v, m):
    return ((v + m - 1) // m) * m


def _pick_time_chunk(T, t_max=32):
    """Chunk length along time; prefer a divisor of T (no masked steps)."""
    if T <= t_max:
        return T
    for cand in range(t_max, 15, -1):
        if T % cand == 0:
            return cand
    return t_max


def _make_lstm_fc_kernel(*, num_layers, seq_len, t_chunk, n_tc, hidden,
                         batch_blk, compute_dtype):
    """Kernel ref order:
       x, [w_ih_T, w_hh_T, bias] * num_layers, fc_w_T, fc_b, out,
       xproj_scratch, (hseq_scratch if num_layers > 1), h_state, c_state.
    Gate order matches PyTorch: i, f, g, o. Weights are pre-transposed so the
    kernel does row-major x @ W on the MXU."""
    H = hidden
    G = 4 * H
    T = seq_len
    Tc = t_chunk
    B = batch_blk
    multi_layer = num_layers > 1
    lane_gates = (H % 128 == 0)          # slices are lane-granular -> free
    need_mask = (n_tc * Tc != T)         # padded timesteps in the last chunk
    unroll = max(1, min(Tc, 8))

    def kernel(*refs):
        x_ref = refs[0]
        layer_refs = refs[1:1 + 3 * num_layers]
        fc_w_ref = refs[1 + 3 * num_layers]
        fc_b_ref = refs[2 + 3 * num_layers]
        out_ref = refs[3 + 3 * num_layers]
        s = 4 + 3 * num_layers
        xproj_ref = refs[s]                                   # (Tc, B, 4H) bf16
        s += 1
        hseq_ref = refs[s] if multi_layer else None           # (Tc, B, H) bf16
        if multi_layer:
            s += 1
        h_state = refs[s]                                     # (L, B, H) f32
        c_state = refs[s + 1]                                 # (L, B, H) f32

        t_idx = pl.program_id(1)

        @pl.when(t_idx == 0)
        def _():
            h_state[...] = jnp.zeros_like(h_state)
            c_state[...] = jnp.zeros_like(c_state)

        t_base = t_idx * Tc

        for l in range(num_layers):
            w_ih_ref = layer_refs[3 * l]        # [D_in, 4H] bf16
            w_hh_ref = layer_refs[3 * l + 1]    # [H,    4H] bf16
            b_ref = layer_refs[3 * l + 2]       # [1,    4H] f32 (= b_ih + b_hh)

            # ---- Hoisted input projection: one big matmul per layer per time
            # chunk, bias folded in once (not per timestep). ----
            if l == 0:
                inp = x_ref[...].reshape(Tc * B, x_ref.shape[-1])
            else:
                inp = hseq_ref[...].reshape(Tc * B, H)
            xp = jnp.dot(inp, w_ih_ref[...],
                         preferred_element_type=jnp.float32) + b_ref[...]
            xproj_ref[...] = xp.reshape(Tc, B, G).astype(xproj_ref.dtype)

            store_seq = multi_layer and (l < num_layers - 1)

            def step(tl, carry, store_seq=store_seq, w_hh_ref=w_hh_ref):
                h, c = carry
                # Only the small recurrent matmul (bf16 x bf16, f32 acc) stays
                # on the serial per-timestep path.
                gates = xproj_ref[tl].astype(jnp.float32) + jnp.dot(
                    h.astype(compute_dtype), w_hh_ref[...],
                    preferred_element_type=jnp.float32)       # [B, 4H] f32
                if lane_gates:
                    sg = jax.nn.sigmoid(gates[:, :2 * H])
                    i_g = sg[:, :H]
                    f_g = sg[:, H:]
                    g_g = jnp.tanh(gates[:, 2 * H:3 * H])
                    o_g = jax.nn.sigmoid(gates[:, 3 * H:])
                else:
                    # H not lane-aligned: full-vreg nonlinearities, then slice.
                    sg = jax.nn.sigmoid(gates)
                    tg = jnp.tanh(gates)
                    i_g = sg[:, 0 * H:1 * H]
                    f_g = sg[:, 1 * H:2 * H]
                    g_g = tg[:, 2 * H:3 * H]
                    o_g = sg[:, 3 * H:4 * H]
                c_new = f_g * c + i_g * g_g
                h_new = o_g * jnp.tanh(c_new)
                if need_mask:
                    valid = (t_base + tl) < T
                    h_new = jnp.where(valid, h_new, h)
                    c_new = jnp.where(valid, c_new, c)
                if store_seq:
                    hseq_ref[tl] = h_new.astype(hseq_ref.dtype)
                return (h_new, c_new)

            h_out, c_out = jax.lax.fori_loop(
                0, Tc, step, (h_state[l], c_state[l]), unroll=unroll)
            h_state[l] = h_out
            c_state[l] = c_out

        # Dropout is identity at inference; final Linear on the last timestep
        # (only the last time chunk holds it).
        @pl.when(t_idx == n_tc - 1)
        def _():
            logits = jnp.dot(h_state[num_layers - 1].astype(compute_dtype),
                             fc_w_ref[...],
                             preferred_element_type=jnp.float32) + fc_b_ref[...]
            out_ref[...] = logits.astype(out_ref.dtype)

    return kernel


def classifier_forward(x, params, *, num_layers, hidden, num_classes,
                       param_dtype=jnp.bfloat16):
    B, T, D = x.shape
    H = hidden
    C_pad = _round_up(max(num_classes, 1), 128)      # lane-dense output stores

    # --- Batch tiling: fill 8 sublanes; >=2 tiles when possible (v7x megacore),
    # capped at 128 rows per tile. ---
    B_min = _round_up(max(B, 1), 8)
    if B_min <= 8:
        B_blk = 8
    elif B_min <= 256:
        B_blk = min(128, _round_up((B_min + 1) // 2, 8))
    else:
        B_blk = 128
    B_pad = _round_up(B_min, B_blk)
    nb = B_pad // B_blk

    # --- Time chunking: stream x in (T_c, B_blk, D) blocks over an "arbitrary"
    # grid axis; (h, c) per layer are carried in VMEM scratch across chunks. ---
    T_c = _pick_time_chunk(T)
    T_pad = _round_up(T, T_c)
    n_tc = T_pad // T_c

    # Batch/time-pad, go time-major (time on the leading, chunked axis), bf16.
    x_tm = jnp.transpose(x.astype(jnp.float32), (1, 0, 2)).astype(param_dtype)
    x_p = jnp.zeros((T_pad, B_pad, D), param_dtype).at[:T, :B, :].set(x_tm)

    inputs = [x_p]
    in_specs = [pl.BlockSpec((T_c, B_blk, D), lambda b, t: (t, b, 0))]
    for l in range(num_layers):
        w_ih, w_hh, b_ih, b_hh = params["lstm"][l]
        w_ih_T = w_ih.T.astype(param_dtype)                      # (D_in, 4H)
        w_hh_T = w_hh.T.astype(param_dtype)                      # (H,    4H)
        bias = (b_ih + b_hh).reshape(1, -1).astype(jnp.float32)  # (1,    4H)
        inputs += [w_ih_T, w_hh_T, bias]
        in_specs += [
            pl.BlockSpec(w_ih_T.shape, lambda b, t: (0, 0)),
            pl.BlockSpec(w_hh_T.shape, lambda b, t: (0, 0)),
            pl.BlockSpec(bias.shape, lambda b, t: (0, 0)),
        ]

    fc_w_T = jnp.zeros((H, C_pad), jnp.float32).at[:, :num_classes].set(
        params["fc_w"].T).astype(param_dtype)
    fc_b = jnp.zeros((1, C_pad), jnp.float32).at[0, :num_classes].set(params["fc_b"])
    inputs += [fc_w_T, fc_b]
    in_specs += [pl.BlockSpec((H, C_pad), lambda b, t: (0, 0)),
                 pl.BlockSpec((1, C_pad), lambda b, t: (0, 0))]

    out_specs = pl.BlockSpec((B_blk, C_pad), lambda b, t: (b, 0))

    scratch_shapes = [pltpu.VMEM((T_c, B_blk, 4 * H), param_dtype)]
    if num_layers > 1:
        scratch_shapes.append(pltpu.VMEM((T_c, B_blk, H), param_dtype))
    scratch_shapes += [pltpu.VMEM((num_layers, B_blk, H), jnp.float32),
                       pltpu.VMEM((num_layers, B_blk, H), jnp.float32)]

    kernel = _make_lstm_fc_kernel(num_layers=num_layers, seq_len=T,
                                  t_chunk=T_c, n_tc=n_tc, hidden=H,
                                  batch_blk=B_blk, compute_dtype=param_dtype)

    # --- Generation-aware VMEM budget: tight estimate + headroom, capped at
    # ~80% of the chip's physical VMEM. ---
    def nbytes(a):
        return a.size * a.dtype.itemsize
    bpe = jnp.dtype(param_dtype).itemsize
    scratch_bytes = T_c * B_blk * 4 * H * bpe
    if num_layers > 1:
        scratch_bytes += T_c * B_blk * H * bpe
    scratch_bytes += 2 * num_layers * B_blk * H * 4
    est = (2 * T_c * B_blk * D * bpe            # double-buffered x chunk
           + 2 * B_blk * C_pad * 4              # output tile
           + 2 * sum(nbytes(a) for a in inputs[1:])  # weights (double-buffered)
           + scratch_bytes)
    try:
        vmem_cap = int(pltpu.get_tpu_info().vmem_capacity_bytes)
    except Exception:
        vmem_cap = 64 << 20                     # conservative (v7x per-core)
    vmem_limit = min(int(est * 1.3) + (4 << 20), int(vmem_cap * 0.8))
    vmem_limit = max(vmem_limit, 16 << 20)

    out = pl.pallas_call(
        kernel,
        out_shape=jax.ShapeDtypeStruct((B_pad, C_pad), jnp.float32),
        grid_spec=pltpu.PrefetchScalarGridSpec(
            num_scalar_prefetch=0,
            grid=(nb, n_tc),
            in_specs=in_specs,
            out_specs=out_specs,
            scratch_shapes=scratch_shapes),
        compiler_params=pltpu.CompilerParams(
            dimension_semantics=("parallel", "arbitrary"),
            vmem_limit_bytes=vmem_limit),
    )(*inputs)
    return out[:B, :num_classes]


def init_params(key, *, input_size, hidden, num_layers, num_classes):
    """Deterministic init mirroring PyTorch's uniform(-1/sqrt(H), 1/sqrt(H))."""
    params = {"lstm": []}
    k = 1.0 / jnp.sqrt(jnp.float32(hidden))
    for l in range(num_layers):
        d_in = input_size if l == 0 else hidden
        key, k1, k2, k3, k4 = jax.random.split(key, 5)
        w_ih = jax.random.uniform(k1, (4 * hidden, d_in), jnp.float32, -k, k)
        w_hh = jax.random.uniform(k2, (4 * hidden, hidden), jnp.float32, -k, k)
        b_ih = jax.random.uniform(k3, (4 * hidden,), jnp.float32, -k, k)
        b_hh = jax.random.uniform(k4, (4 * hidden,), jnp.float32, -k, k)
        params["lstm"].append((w_ih, w_hh, b_ih, b_hh))
    key, k5, k6 = jax.random.split(key, 3)
    params["fc_w"] = jax.random.uniform(k5, (num_classes, hidden), jnp.float32, -k, k)
    params["fc_b"] = jax.random.uniform(k6, (num_classes,), jnp.float32, -k, k)
    return params


def reference_forward(x, params, *, num_layers, hidden,
                      param_dtype=jnp.bfloat16):
    """Pure-JAX reference (PyTorch LSTM semantics) mirroring the kernel's
    quantization points (bf16 weights/inputs, bf16 pre-activations and
    recurrent-matmul inputs) with f32 math/accumulation."""
    def q(a):
        return a.astype(param_dtype).astype(jnp.float32)

    hp = jax.lax.Precision.HIGHEST
    B, T, _ = x.shape
    H = hidden
    seq = q(x)
    for l in range(num_layers):
        w_ih, w_hh, b_ih, b_hh = params["lstm"][l]
        w_ih_T, w_hh_T = q(w_ih).T, q(w_hh).T
        bias = b_ih + b_hh
        xproj = q(jnp.einsum("btd,dg->btg", seq, w_ih_T, precision=hp) + bias)
        h = jnp.zeros((B, H), jnp.float32)
        c = jnp.zeros((B, H), jnp.float32)
        outs = []
        for t in range(T):
            gates = xproj[:, t, :] + jnp.dot(q(h), w_hh_T, precision=hp)
            i_g = jax.nn.sigmoid(gates[:, 0 * H:1 * H])
            f_g = jax.nn.sigmoid(gates[:, 1 * H:2 * H])
            g_g = jnp.tanh(gates[:, 2 * H:3 * H])
            o_g = jax.nn.sigmoid(gates[:, 3 * H:4 * H])
            c = f_g * c + i_g * g_g
            h = o_g * jnp.tanh(c)
            outs.append(q(h) if l < num_layers - 1 else h)
        seq = jnp.stack(outs, axis=1)
    return (jnp.dot(q(seq[:, -1, :]), q(params["fc_w"]).T, precision=hp)
            + params["fc_b"])


if __name__ == "__main__":
    batch, seq_len, input_size = 2, 8, 16
    hidden, num_layers, num_classes = 32, 2, 4

    key = jax.random.PRNGKey(0)
    key, xk = jax.random.split(key)
    x = jax.random.normal(xk, (batch, seq_len, input_size), jnp.float32)

    params = init_params(key, input_size=input_size, hidden=hidden,
                         num_layers=num_layers, num_classes=num_classes)

    out = classifier_forward(x, params, num_layers=num_layers,
                             hidden=hidden, num_classes=num_classes)
    out = jax.block_until_ready(out)

    ref = reference_forward(x, params, num_layers=num_layers, hidden=hidden)
    assert out.shape == (batch, num_classes), out.shape
    assert jnp.allclose(out, ref, atol=1e-2, rtol=1e-2), (out, ref)

    print("KERNEL_OK")
</pallas_src>

<mosaic_0001>
module attributes {stable_mosaic.version = 11 : i64} {
  func.func @kernel(%arg0: i32, %arg1: i32, %arg2: memref<8x8x16xbf16, #tpu.memory_space<vmem>>, %arg3: memref<16x128xbf16, #tpu.memory_space<vmem>>, %arg4: memref<32x128xbf16, #tpu.memory_space<vmem>>, %arg5: memref<1x128xf32, #tpu.memory_space<vmem>>, %arg6: memref<32x128xbf16, #tpu.memory_space<vmem>>, %arg7: memref<32x128xbf16, #tpu.memory_space<vmem>>, %arg8: memref<1x128xf32, #tpu.memory_space<vmem>>, %arg9: memref<32x128xbf16, #tpu.memory_space<vmem>>, %arg10: memref<1x128xf32, #tpu.memory_space<vmem>>, %arg11: memref<8x128xf32, #tpu.memory_space<vmem>>, %arg12: memref<8x8x128xbf16, #tpu.memory_space<vmem>>, %arg13: memref<8x8x32xbf16, #tpu.memory_space<vmem>>, %arg14: memref<2x8x32xf32, #tpu.memory_space<vmem>>, %arg15: memref<2x8x32xf32, #tpu.memory_space<vmem>>) attributes {dimension_semantics = [#tpu.dimension_semantics<parallel>, #tpu.dimension_semantics<arbitrary>], iteration_bounds = array<i64: 1, 1>, scalar_prefetch = 0 : i64, scratch_operands = 4 : i64, tpu.core_type = #tpu.core_type<tc>, window_params = [{transform_indices = @transform_0, window_bounds = array<i64: 8, 8, 16>}, {pipeline_mode = #tpu.pipeline_mode<synchronous>, transform_indices = @transform_1, window_bounds = array<i64: 16, 128>}, {pipeline_mode = #tpu.pipeline_mode<synchronous>, transform_indices = @transform_2, window_bounds = array<i64: 32, 128>}, {pipeline_mode = #tpu.pipeline_mode<synchronous>, transform_indices = @transform_3, window_bounds = array<i64: 1, 128>}, {pipeline_mode = #tpu.pipeline_mode<synchronous>, transform_indices = @transform_4, window_bounds = array<i64: 32, 128>}, {pipeline_mode = #tpu.pipeline_mode<synchronous>, transform_indices = @transform_5, window_bounds = array<i64: 32, 128>}, {pipeline_mode = #tpu.pipeline_mode<synchronous>, transform_indices = @transform_6, window_bounds = array<i64: 1, 128>}, {pipeline_mode = #tpu.pipeline_mode<synchronous>, transform_indices = @transform_7, window_bounds = array<i64: 32, 128>}, {pipeline_mode = #tpu.pipeline_mode<synchronous>, transform_indices = @transform_8, window_bounds = array<i64: 1, 128>}, {transform_indices = @transform_9, window_bounds = array<i64: 8, 128>}]} {
    %c0_i32 = arith.constant 0 : i32
    %0 = arith.cmpi eq, %arg1, %c0_i32 : i32
    %1 = arith.extui %0 : i1 to i32
    %c0_i32_0 = arith.constant 0 : i32
    %2 = arith.cmpi ne, %1, %c0_i32_0 : i32
    scf.if %2 {
      %cst_168 = arith.constant 0.000000e+00 : f32
      %454 = vector.broadcast %cst_168 : f32 to vector<2x8x32xf32>
      %c0_169 = arith.constant 0 : index
      %c0_170 = arith.constant 0 : index
      %c0_171 = arith.constant 0 : index
      %455 = vector.load %arg14[%c0_169, %c0_170, %c0_171] : memref<2x8x32xf32, #tpu.memory_space<vmem>>, vector<2x8x32xf32>
      tpu.vector_store %arg14[%c0_169, %c0_170, %c0_171], %454 {strides = array<i32>} : memref<2x8x32xf32, #tpu.memory_space<vmem>>, vector<2x8x32xf32>,
      %cst_172 = arith.constant 0.000000e+00 : f32
      %456 = vector.broadcast %cst_172 : f32 to vector<2x8x32xf32>
      %c0_173 = arith.constant 0 : index
      %c0_174 = arith.constant 0 : index
      %c0_175 = arith.constant 0 : index
      %457 = vector.load %arg15[%c0_173, %c0_174, %c0_175] : memref<2x8x32xf32, #tpu.memory_space<vmem>>, vector<2x8x32xf32>
      tpu.vector_store %arg15[%c0_173, %c0_174, %c0_175], %456 {strides = array<i32>} : memref<2x8x32xf32, #tpu.memory_space<vmem>>, vector<2x8x32xf32>,
    } else {
    }
    %c0 = arith.constant 0 : index
    %c0_1 = arith.constant 0 : index
    %c0_2 = arith.constant 0 : index
    %3 = vector.load %arg2[%c0, %c0_1, %c0_2] : memref<8x8x16xbf16, #tpu.memory_space<vmem>>, vector<8x8x16xbf16>
    %4 = vector.shape_cast %3 : vector<8x8x16xbf16> to vector<64x16xbf16>
    %c0_3 = arith.constant 0 : index
    %c0_4 = arith.constant 0 : index
    %5 = vector.load %arg3[%c0_3, %c0_4] : memref<16x128xbf16, #tpu.memory_space<vmem>>, vector<16x128xbf16>
    %cst = arith.constant dense<0.000000e+00> : vector<64x128xf32>
    %6 = tpu.matmul %4, %5, %cst {dimension_numbers = #tpu.dot_dimension_numbers<[1], [0], [0], [1], [0, 0, 1, 1], [], []>} : vector<64x16xbf16>, vector<16x128xbf16>, vector<64x128xf32> -> vector<64x128xf32>
    %c0_5 = arith.constant 0 : index
    %c0_6 = arith.constant 0 : index
    %7 = vector.load %arg5[%c0_5, %c0_6] : memref<1x128xf32, #tpu.memory_space<vmem>>, vector<1x128xf32>
    %8 = vector.broadcast %7 : vector<1x128xf32> to vector<64x128xf32>
    %9 = arith.addf %6, %8 : vector<64x128xf32>
    %10 = vector.shape_cast %9 : vector<64x128xf32> to vector<8x8x128xf32>
    %11 = arith.truncf %10 : vector<8x8x128xf32> to vector<8x8x128xbf16>
    %c0_7 = arith.constant 0 : index
    %c0_8 = arith.constant 0 : index
    %c0_9 = arith.constant 0 : index
    %12 = vector.load %arg12[%c0_7, %c0_8, %c0_9] : memref<8x8x128xbf16, #tpu.memory_space<vmem>>, vector<8x8x128xbf16>
    tpu.vector_store %arg12[%c0_7, %c0_8, %c0_9], %11 {strides = array<i32>} : memref<8x8x128xbf16, #tpu.memory_space<vmem>>, vector<8x8x128xbf16>,
    %c0_10 = arith.constant 0 : index
    %c0_11 = arith.constant 0 : index
    %c0_12 = arith.constant 0 : index
    %13 = vector.load %arg14[%c0_10, %c0_11, %c0_12] : memref<2x8x32xf32, #tpu.memory_space<vmem>>, vector<1x8x32xf32>
    %14 = vector.shape_cast %13 : vector<1x8x32xf32> to vector<8x32xf32>
    %c0_13 = arith.constant 0 : index
    %c0_14 = arith.constant 0 : index
    %c0_15 = arith.constant 0 : index
    %15 = vector.load %arg15[%c0_13, %c0_14, %c0_15] : memref<2x8x32xf32, #tpu.memory_space<vmem>>, vector<1x8x32xf32>
    %16 = vector.shape_cast %15 : vector<1x8x32xf32> to vector<8x32xf32>
    %c0_i32_16 = arith.constant 0 : i32
    %17 = arith.index_cast %c0_i32_16 : i32 to index
    %c0_17 = arith.constant 0 : index
    %c0_18 = arith.constant 0 : index
    %18 = vector.load %arg12[%17, %c0_17, %c0_18] : memref<8x8x128xbf16, #tpu.memory_space<vmem>>, vector<1x8x128xbf16>
    %19 = vector.shape_cast %18 : vector<1x8x128xbf16> to vector<8x128xbf16>
    %20 = arith.extf %19 : vector<8x128xbf16> to vector<8x128xf32>
    %21 = arith.truncf %14 : vector<8x32xf32> to vector<8x32xbf16>
    %c0_19 = arith.constant 0 : index
    %c0_20 = arith.constant 0 : index
    %22 = vector.load %arg4[%c0_19, %c0_20] : memref<32x128xbf16, #tpu.memory_space<vmem>>, vector<32x128xbf16>
    %cst_21 = arith.constant dense<0.000000e+00> : vector<8x128xf32>
    %23 = tpu.matmul %21, %22, %cst_21 {dimension_numbers = #tpu.dot_dimension_numbers<[1], [0], [0], [1], [0, 0, 1, 1], [], []>} : vector<8x32xbf16>, vector<32x128xbf16>, vector<8x128xf32> -> vector<8x128xf32>
    %24 = arith.addf %20, %23 : vector<8x128xf32>
    %25 = arith.negf %24 : vector<8x128xf32>
    %26 = math.exp %25 : vector<8x128xf32>
    %cst_22 = arith.constant 1.000000e+00 : f32
    %27 = vector.broadcast %cst_22 : f32 to vector<8x128xf32>
    %28 = arith.addf %27, %26 : vector<8x128xf32>
    %29 = arith.divf %27, %28 : vector<8x128xf32>
    %30 = math.tanh %24 : vector<8x128xf32>
    %31 = vector.extract_strided_slice %29 {offsets = [0, 0], sizes = [8, 32], strides = [1, 1]} : vector<8x128xf32> to vector<8x32xf32>
    %32 = vector.extract_strided_slice %29 {offsets = [0, 32], sizes = [8, 32], strides = [1, 1]} : vector<8x128xf32> to vector<8x32xf32>
    %33 = vector.extract_strided_slice %30 {offsets = [0, 64], sizes = [8, 32], strides = [1, 1]} : vector<8x128xf32> to vector<8x32xf32>
    %34 = vector.extract_strided_slice %29 {offsets = [0, 96], sizes = [8, 32], strides = [1, 1]} : vector<8x128xf32> to vector<8x32xf32>
    %35 = arith.mulf %32, %16 : vector<8x32xf32>
    %36 = arith.mulf %31, %33 : vector<8x32xf32>
    %37 = arith.addf %35, %36 : vector<8x32xf32>
    %38 = math.tanh %37 : vector<8x32xf32>
    %39 = arith.mulf %34, %38 : vector<8x32xf32>
    %40 = arith.truncf %39 : vector<8x32xf32> to vector<8x32xbf16>
    %41 = arith.index_cast %c0_i32_16 : i32 to index
    %c0_23 = arith.constant 0 : index
    %c0_24 = arith.constant 0 : index
    %42 = vector.load %arg13[%41, %c0_23, %c0_24] : memref<8x8x32xbf16, #tpu.memory_space<vmem>>, vector<1x8x32xbf16>
    %43 = vector.shape_cast %42 : vector<1x8x32xbf16> to vector<8x32xbf16>
    %44 = vector.shape_cast %40 : vector<8x32xbf16> to vector<1x8x32xbf16>
    tpu.vector_store %arg13[%41, %c0_23, %c0_24], %44 {strides = array<i32>} : memref<8x8x32xbf16, #tpu.memory_space<vmem>>, vector<1x8x32xbf16>,
    %c1_i32 = arith.constant 1 : i32
    %45 = arith.index_cast %c1_i32 : i32 to index
    %c0_25 = arith.constant 0 : index
    %c0_26 = arith.constant 0 : index
    %46 = vector.load %arg12[%45, %c0_25, %c0_26] : memref<8x8x128xbf16, #tpu.memory_space<vmem>>, vector<1x8x128xbf16>
    %47 = vector.shape_cast %46 : vector<1x8x128xbf16> to vector<8x128xbf16>
    %48 = arith.extf %47 : vector<8x128xbf16> to vector<8x128xf32>
    %49 = arith.truncf %39 : vector<8x32xf32> to vector<8x32xbf16>
    %c0_27 = arith.constant 0 : index
    %c0_28 = arith.constant 0 : index
    %50 = vector.load %arg4[%c0_27, %c0_28] : memref<32x128xbf16, #tpu.memory_space<vmem>>, vector<32x128xbf16>
    %cst_29 = arith.constant dense<0.000000e+00> : vector<8x128xf32>
    %51 = tpu.matmul %49, %50, %cst_29 {dimension_numbers = #tpu.dot_dimension_numbers<[1], [0], [0], [1], [0, 0, 1, 1], [], []>} : vector<8x32xbf16>, vector<32x128xbf16>, vector<8x128xf32> -> vector<8x128xf32>
    %52 = arith.addf %48, %51 : vector<8x128xf32>
    %53 = arith.negf %52 : vector<8x128xf32>
    %54 = math.exp %53 : vector<8x128xf32>
    %cst_30 = arith.constant 1.000000e+00 : f32
    %55 = vector.broadcast %cst_30 : f32 to vector<8x128xf32>
    %56 = arith.addf %55, %54 : vector<8x128xf32>
    %57 = arith.divf %55, %56 : vector<8x128xf32>
    %58 = math.tanh %52 : vector<8x128xf32>
    %59 = vector.extract_strided_slice %57 {offsets = [0, 0], sizes = [8, 32], strides = [1, 1]} : vector<8x128xf32> to vector<8x32xf32>
    %60 = vector.extract_strided_slice %57 {offsets = [0, 32], sizes = [8, 32], strides = [1, 1]} : vector<8x128xf32> to vector<8x32xf32>
    %61 = vector.extract_strided_slice %58 {offsets = [0, 64], sizes = [8, 32], strides = [1, 1]} : vector<8x128xf32> to vector<8x32xf32>
    %62 = vector.extract_strided_slice %57 {offsets = [0, 96], sizes = [8, 32], strides = [1, 1]} : vector<8x128xf32> to vector<8x32xf32>
    %63 = arith.mulf %60, %37 : vector<8x32xf32>
    %64 = arith.mulf %59, %61 : vector<8x32xf32>
    %65 = arith.addf %63, %64 : vector<8x32xf32>
    %66 = math.tanh %65 : vector<8x32xf32>
    %67 = arith.mulf %62, %66 : vector<8x32xf32>
    %68 = arith.truncf %67 : vector<8x32xf32> to vector<8x32xbf16>
    %69 = arith.index_cast %c1_i32 : i32 to index
    %c0_31 = arith.constant 0 : index
    %c0_32 = arith.constant 0 : index
    %70 = vector.load %arg13[%69, %c0_31, %c0_32] : memref<8x8x32xbf16, #tpu.memory_space<vmem>>, vector<1x8x32xbf16>
    %71 = vector.shape_cast %70 : vector<1x8x32xbf16> to vector<8x32xbf16>
    %72 = vector.shape_cast %68 : vector<8x32xbf16> to vector<1x8x32xbf16>
    tpu.vector_store %arg13[%69, %c0_31, %c0_32], %72 {strides = array<i32>} : memref<8x8x32xbf16, #tpu.memory_space<vmem>>, vector<1x8x32xbf16>,
    %c2_i32 = arith.constant 2 : i32
    %73 = arith.index_cast %c2_i32 : i32 to index
    %c0_33 = arith.constant 0 : index
    %c0_34 = arith.constant 0 : index
    %74 = vector.load %arg12[%73, %c0_33, %c0_34] : memref<8x8x128xbf16, #tpu.memory_space<vmem>>, vector<1x8x128xbf16>
    %75 = vector.shape_cast %74 : vector<1x8x128xbf16> to vector<8x128xbf16>
    %76 = arith.extf %75 : vector<8x128xbf16> to vector<8x128xf32>
    %77 = arith.truncf %67 : vector<8x32xf32> to vector<8x32xbf16>
    %c0_35 = arith.constant 0 : index
    %c0_36 = arith.constant 0 : index
    %78 = vector.load %arg4[%c0_35, %c0_36] : memref<32x128xbf16, #tpu.memory_space<vmem>>, vector<32x128xbf16>
    %cst_37 = arith.constant dense<0.000000e+00> : vector<8x128xf32>
    %79 = tpu.matmul %77, %78, %cst_37 {dimension_numbers = #tpu.dot_dimension_numbers<[1], [0], [0], [1], [0, 0, 1, 1], [], []>} : vector<8x32xbf16>, vector<32x128xbf16>, vector<8x128xf32> -> vector<8x128xf32>
    %80 = arith.addf %76, %79 : vector<8x128xf32>
    %81 = arith.negf %80 : vector<8x128xf32>
    %82 = math.exp %81 : vector<8x128xf32>
    %cst_38 = arith.constant 1.000000e+00 : f32
    %83 = vector.broadcast %cst_38 : f32 to vector<8x128xf32>
    %84 = arith.addf %83, %82 : vector<8x128xf32>
    %85 = arith.divf %83, %84 : vector<8x128xf32>
    %86 = math.tanh %80 : vector<8x128xf32>
    %87 = vector.extract_strided_slice %85 {offsets = [0, 0], sizes = [8, 32], strides = [1, 1]} : vector<8x128xf32> to vector<8x32xf32>
    %88 = vector.extract_strided_slice %85 {offsets = [0, 32], sizes = [8, 32], strides = [1, 1]} : vector<8x128xf32> to vector<8x32xf32>
    %89 = vector.extract_strided_slice %86 {offsets = [0, 64], sizes = [8, 32], strides = [1, 1]} : vector<8x128xf32> to vector<8x32xf32>
    %90 = vector.extract_strided_slice %85 {offsets = [0, 96], sizes = [8, 32], strides = [1, 1]} : vector<8x128xf32> to vector<8x32xf32>
    %91 = arith.mulf %88, %65 : vector<8x32xf32>
    %92 = arith.mulf %87, %89 : vector<8x32xf32>
    %93 = arith.addf %91, %92 : vector<8x32xf32>
    %94 = math.tanh %93 : vector<8x32xf32>
    %95 = arith.mulf %90, %94 : vector<8x32xf32>
    %96 = arith.truncf %95 : vector<8x32xf32> to vector<8x32xbf16>
    %97 = arith.index_cast %c2_i32 : i32 to index
    %c0_39 = arith.constant 0 : index
    %c0_40 = arith.constant 0 : index
    %98 = vector.load %arg13[%97, %c0_39, %c0_40] : memref<8x8x32xbf16, #tpu.memory_space<vmem>>, vector<1x8x32xbf16>
    %99 = vector.shape_cast %98 : vector<1x8x32xbf16> to vector<8x32xbf16>
    %100 = vector.shape_cast %96 : vector<8x32xbf16> to vector<1x8x32xbf16>
    tpu.vector_store %arg13[%97, %c0_39, %c0_40], %100 {strides = array<i32>} : memref<8x8x32xbf16, #tpu.memory_space<vmem>>, vector<1x8x32xbf16>,
    %c3_i32 = arith.constant 3 : i32
    %101 = arith.index_cast %c3_i32 : i32 to index
    %c0_41 = arith.constant 0 : index
    %c0_42 = arith.constant 0 : index
    %102 = vector.load %arg12[%101, %c0_41, %c0_42] : memref<8x8x128xbf16, #tpu.memory_space<vmem>>, vector<1x8x128xbf16>
    %103 = vector.shape_cast %102 : vector<1x8x128xbf16> to vector<8x128xbf16>
    %104 = arith.extf %103 : vector<8x128xbf16> to vector<8x128xf32>
    %105 = arith.truncf %95 : vector<8x32xf32> to vector<8x32xbf16>
    %c0_43 = arith.constant 0 : index
    %c0_44 = arith.constant 0 : index
    %106 = vector.load %arg4[%c0_43, %c0_44] : memref<32x128xbf16, #tpu.memory_space<vmem>>, vector<32x128xbf16>
    %cst_45 = arith.constant dense<0.000000e+00> : vector<8x128xf32>
    %107 = tpu.matmul %105, %106, %cst_45 {dimension_numbers = #tpu.dot_dimension_numbers<[1], [0], [0], [1], [0, 0, 1, 1], [], []>} : vector<8x32xbf16>, vector<32x128xbf16>, vector<8x128xf32> -> vector<8x128xf32>
    %108 = arith.addf %104, %107 : vector<8x128xf32>
    %109 = arith.negf %108 : vector<8x128xf32>
    %110 = math.exp %109 : vector<8x128xf32>
    %cst_46 = arith.constant 1.000000e+00 : f32
    %111 = vector.broadcast %cst_46 : f32 to vector<8x128xf32>
    %112 = arith.addf %111, %110 : vector<8x128xf32>
    %113 = arith.divf %111, %112 : vector<8x128xf32>
    %114 = math.tanh %108 : vector<8x128xf32>
    %115 = vector.extract_strided_slice %113 {offsets = [0, 0], sizes = [8, 32], strides = [1, 1]} : vector<8x128xf32> to vector<8x32xf32>
    %116 = vector.extract_strided_slice %113 {offsets = [0, 32], sizes = [8, 32], strides = [1, 1]} : vector<8x128xf32> to vector<8x32xf32>
    %117 = vector.extract_strided_slice %114 {offsets = [0, 64], sizes = [8, 32], strides = [1, 1]} : vector<8x128xf32> to vector<8x32xf32>
    %118 = vector.extract_strided_slice %113 {offsets = [0, 96], sizes = [8, 32], strides = [1, 1]} : vector<8x128xf32> to vector<8x32xf32>
    %119 = arith.mulf %116, %93 : vector<8x32xf32>
    %120 = arith.mulf %115, %117 : vector<8x32xf32>
    %121 = arith.addf %119, %120 : vector<8x32xf32>
    %122 = math.tanh %121 : vector<8x32xf32>
    %123 = arith.mulf %118, %122 : vector<8x32xf32>
    %124 = arith.truncf %123 : vector<8x32xf32> to vector<8x32xbf16>
    %125 = arith.index_cast %c3_i32 : i32 to index
    %c0_47 = arith.constant 0 : index
    %c0_48 = arith.constant 0 : index
    %126 = vector.load %arg13[%125, %c0_47, %c0_48] : memref<8x8x32xbf16, #tpu.memory_space<vmem>>, vector<1x8x32xbf16>
    %127 = vector.shape_cast %126 : vector<1x8x32xbf16> to vector<8x32xbf16>
    %128 = vector.shape_cast %124 : vector<8x32xbf16> to vector<1x8x32xbf16>
    tpu.vector_store %arg13[%125, %c0_47, %c0_48], %128 {strides = array<i32>} : memref<8x8x32xbf16, #tpu.memory_space<vmem>>, vector<1x8x32xbf16>,
    %c4_i32 = arith.constant 4 : i32
    %129 = arith.index_cast %c4_i32 : i32 to index
    %c0_49 = arith.constant 0 : index
    %c0_50 = arith.constant 0 : index
    %130 = vector.load %arg12[%129, %c0_49, %c0_50] : memref<8x8x128xbf16, #tpu.memory_space<vmem>>, vector<1x8x128xbf16>
    %131 = vector.shape_cast %130 : vector<1x8x128xbf16> to vector<8x128xbf16>
    %132 = arith.extf %131 : vector<8x128xbf16> to vector<8x128xf32>
    %133 = arith.truncf %123 : vector<8x32xf32> to vector<8x32xbf16>
    %c0_51 = arith.constant 0 : index
    %c0_52 = arith.constant 0 : index
    %134 = vector.load %arg4[%c0_51, %c0_52] : memref<32x128xbf16, #tpu.memory_space<vmem>>, vector<32x128xbf16>
    %cst_53 = arith.constant dense<0.000000e+00> : vector<8x128xf32>
    %135 = tpu.matmul %133, %134, %cst_53 {dimension_numbers = #tpu.dot_dimension_numbers<[1], [0], [0], [1], [0, 0, 1, 1], [], []>} : vector<8x32xbf16>, vector<32x128xbf16>, vector<8x128xf32> -> vector<8x128xf32>
    %136 = arith.addf %132, %135 : vector<8x128xf32>
    %137 = arith.negf %136 : vector<8x128xf32>
    %138 = math.exp %137 : vector<8x128xf32>
    %cst_54 = arith.constant 1.000000e+00 : f32
    %139 = vector.broadcast %cst_54 : f32 to vector<8x128xf32>
    %140 = arith.addf %139, %138 : vector<8x128xf32>
    %141 = arith.divf %139, %140 : vector<8x128xf32>
    %142 = math.tanh %136 : vector<8x128xf32>
    %143 = vector.extract_strided_slice %141 {offsets = [0, 0], sizes = [8, 32], strides = [1, 1]} : vector<8x128xf32> to vector<8x32xf32>
    %144 = vector.extract_strided_slice %141 {offsets = [0, 32], sizes = [8, 32], strides = [1, 1]} : vector<8x128xf32> to vector<8x32xf32>
    %145 = vector.extract_strided_slice %142 {offsets = [0, 64], sizes = [8, 32], strides = [1, 1]} : vector<8x128xf32> to vector<8x32xf32>
    %146 = vector.extract_strided_slice %141 {offsets = [0, 96], sizes = [8, 32], strides = [1, 1]} : vector<8x128xf32> to vector<8x32xf32>
    %147 = arith.mulf %144, %121 : vector<8x32xf32>
    %148 = arith.mulf %143, %145 : vector<8x32xf32>
    %149 = arith.addf %147, %148 : vector<8x32xf32>
    %150 = math.tanh %149 : vector<8x32xf32>
    %151 = arith.mulf %146, %150 : vector<8x32xf32>
    %152 = arith.truncf %151 : vector<8x32xf32> to vector<8x32xbf16>
    %153 = arith.index_cast %c4_i32 : i32 to index
    %c0_55 = arith.constant 0 : index
    %c0_56 = arith.constant 0 : index
    %154 = vector.load %arg13[%153, %c0_55, %c0_56] : memref<8x8x32xbf16, #tpu.memory_space<vmem>>, vector<1x8x32xbf16>
    %155 = vector.shape_cast %154 : vector<1x8x32xbf16> to vector<8x32xbf16>
    %156 = vector.shape_cast %152 : vector<8x32xbf16> to vector<1x8x32xbf16>
    tpu.vector_store %arg13[%153, %c0_55, %c0_56], %156 {strides = array<i32>} : memref<8x8x32xbf16, #tpu.memory_space<vmem>>, vector<1x8x32xbf16>,
    %c5_i32 = arith.constant 5 : i32
    %157 = arith.index_cast %c5_i32 : i32 to index
    %c0_57 = arith.constant 0 : index
    %c0_58 = arith.constant 0 : index
    %158 = vector.load %arg12[%157, %c0_57, %c0_58] : memref<8x8x128xbf16, #tpu.memory_space<vmem>>, vector<1x8x128xbf16>
    %159 = vector.shape_cast %158 : vector<1x8x128xbf16> to vector<8x128xbf16>
    %160 = arith.extf %159 : vector<8x128xbf16> to vector<8x128xf32>
    %161 = arith.truncf %151 : vector<8x32xf32> to vector<8x32xbf16>
    %c0_59 = arith.constant 0 : index
    %c0_60 = arith.constant 0 : index
    %162 = vector.load %arg4[%c0_59, %c0_60] : memref<32x128xbf16, #tpu.memory_space<vmem>>, vector<32x128xbf16>
    %cst_61 = arith.constant dense<0.000000e+00> : vector<8x128xf32>
    %163 = tpu.matmul %161, %162, %cst_61 {dimension_numbers = #tpu.dot_dimension_numbers<[1], [0], [0], [1], [0, 0, 1, 1], [], []>} : vector<8x32xbf16>, vector<32x128xbf16>, vector<8x128xf32> -> vector<8x128xf32>
    %164 = arith.addf %160, %163 : vector<8x128xf32>
    %165 = arith.negf %164 : vector<8x128xf32>
    %166 = math.exp %165 : vector<8x128xf32>
    %cst_62 = arith.constant 1.000000e+00 : f32
    %167 = vector.broadcast %cst_62 : f32 to vector<8x128xf32>
    %168 = arith.addf %167, %166 : vector<8x128xf32>
    %169 = arith.divf %167, %168 : vector<8x128xf32>
    %170 = math.tanh %164 : vector<8x128xf32>
    %171 = vector.extract_strided_slice %169 {offsets = [0, 0], sizes = [8, 32], strides = [1, 1]} : vector<8x128xf32> to vector<8x32xf32>
    %172 = vector.extract_strided_slice %169 {offsets = [0, 32], sizes = [8, 32], strides = [1, 1]} : vector<8x128xf32> to vector<8x32xf32>
    %173 = vector.extract_strided_slice %170 {offsets = [0, 64], sizes = [8, 32], strides = [1, 1]} : vector<8x128xf32> to vector<8x32xf32>
    %174 = vector.extract_strided_slice %169 {offsets = [0, 96], sizes = [8, 32], strides = [1, 1]} : vector<8x128xf32> to vector<8x32xf32>
    %175 = arith.mulf %172, %149 : vector<8x32xf32>
    %176 = arith.mulf %171, %173 : vector<8x32xf32>
    %177 = arith.addf %175, %176 : vector<8x32xf32>
    %178 = math.tanh %177 : vector<8x32xf32>
    %179 = arith.mulf %174, %178 : vector<8x32xf32>
    %180 = arith.truncf %179 : vector<8x32xf32> to vector<8x32xbf16>
    %181 = arith.index_cast %c5_i32 : i32 to index
    %c0_63 = arith.constant 0 : index
    %c0_64 = arith.constant 0 : index
    %182 = vector.load %arg13[%181, %c0_63, %c0_64] : memref<8x8x32xbf16, #tpu.memory_space<vmem>>, vector<1x8x32xbf16>
    %183 = vector.shape_cast %182 : vector<1x8x32xbf16> to vector<8x32xbf16>
    %184 = vector.shape_cast %180 : vector<8x32xbf16> to vector<1x8x32xbf16>
    tpu.vector_store %arg13[%181, %c0_63, %c0_64], %184 {strides = array<i32>} : memref<8x8x32xbf16, #tpu.memory_space<vmem>>, vector<1x8x32xbf16>,
    %c6_i32 = arith.constant 6 : i32
    %185 = arith.index_cast %c6_i32 : i32 to index
    %c0_65 = arith.constant 0 : index
    %c0_66 = arith.constant 0 : index
    %186 = vector.load %arg12[%185, %c0_65, %c0_66] : memref<8x8x128xbf16, #tpu.memory_space<vmem>>, vector<1x8x128xbf16>
    %187 = vector.shape_cast %186 : vector<1x8x128xbf16> to vector<8x128xbf16>
    %188 = arith.extf %187 : vector<8x128xbf16> to vector<8x128xf32>
    %189 = arith.truncf %179 : vector<8x32xf32> to vector<8x32xbf16>
    %c0_67 = arith.constant 0 : index
    %c0_68 = arith.constant 0 : index
    %190 = vector.load %arg4[%c0_67, %c0_68] : memref<32x128xbf16, #tpu.memory_space<vmem>>, vector<32x128xbf16>
    %cst_69 = arith.constant dense<0.000000e+00> : vector<8x128xf32>
    %191 = tpu.matmul %189, %190, %cst_69 {dimension_numbers = #tpu.dot_dimension_numbers<[1], [0], [0], [1], [0, 0, 1, 1], [], []>} : vector<8x32xbf16>, vector<32x128xbf16>, vector<8x128xf32> -> vector<8x128xf32>
    %192 = arith.addf %188, %191 : vector<8x128xf32>
    %193 = arith.negf %192 : vector<8x128xf32>
    %194 = math.exp %193 : vector<8x128xf32>
    %cst_70 = arith.constant 1.000000e+00 : f32
    %195 = vector.broadcast %cst_70 : f32 to vector<8x128xf32>
    %196 = arith.addf %195, %194 : vector<8x128xf32>
    %197 = arith.divf %195, %196 : vector<8x128xf32>
    %198 = math.tanh %192 : vector<8x128xf32>
    %199 = vector.extract_strided_slice %197 {offsets = [0, 0], sizes = [8, 32], strides = [1, 1]} : vector<8x128xf32> to vector<8x32xf32>
    %200 = vector.extract_strided_slice %197 {offsets = [0, 32], sizes = [8, 32], strides = [1, 1]} : vector<8x128xf32> to vector<8x32xf32>
    %201 = vector.extract_strided_slice %198 {offsets = [0, 64], sizes = [8, 32], strides = [1, 1]} : vector<8x128xf32> to vector<8x32xf32>
    %202 = vector.extract_strided_slice %197 {offsets = [0, 96], sizes = [8, 32], strides = [1, 1]} : vector<8x128xf32> to vector<8x32xf32>
    %203 = arith.mulf %200, %177 : vector<8x32xf32>
    %204 = arith.mulf %199, %201 : vector<8x32xf32>
    %205 = arith.addf %203, %204 : vector<8x32xf32>
    %206 = math.tanh %205 : vector<8x32xf32>
    %207 = arith.mulf %202, %206 : vector<8x32xf32>
    %208 = arith.truncf %207 : vector<8x32xf32> to vector<8x32xbf16>
    %209 = arith.index_cast %c6_i32 : i32 to index
    %c0_71 = arith.constant 0 : index
    %c0_72 = arith.constant 0 : index
    %210 = vector.load %arg13[%209, %c0_71, %c0_72] : memref<8x8x32xbf16, #tpu.memory_space<vmem>>, vector<1x8x32xbf16>
    %211 = vector.shape_cast %210 : vector<1x8x32xbf16> to vector<8x32xbf16>
    %212 = vector.shape_cast %208 : vector<8x32xbf16> to vector<1x8x32xbf16>
    tpu.vector_store %arg13[%209, %c0_71, %c0_72], %212 {strides = array<i32>} : memref<8x8x32xbf16, #tpu.memory_space<vmem>>, vector<1x8x32xbf16>,
    %c7_i32 = arith.constant 7 : i32
    %213 = arith.index_cast %c7_i32 : i32 to index
    %c0_73 = arith.constant 0 : index
    %c0_74 = arith.constant 0 : index
    %214 = vector.load %arg12[%213, %c0_73, %c0_74] : memref<8x8x128xbf16, #tpu.memory_space<vmem>>, vector<1x8x128xbf16>
    %215 = vector.shape_cast %214 : vector<1x8x128xbf16> to vector<8x128xbf16>
    %216 = arith.extf %215 : vector<8x128xbf16> to vector<8x128xf32>
    %217 = arith.truncf %207 : vector<8x32xf32> to vector<8x32xbf16>
    %c0_75 = arith.constant 0 : index
    %c0_76 = arith.constant 0 : index
    %218 = vector.load %arg4[%c0_75, %c0_76] : memref<32x128xbf16, #tpu.memory_space<vmem>>, vector<32x128xbf16>
    %cst_77 = arith.constant dense<0.000000e+00> : vector<8x128xf32>
    %219 = tpu.matmul %217, %218, %cst_77 {dimension_numbers = #tpu.dot_dimension_numbers<[1], [0], [0], [1], [0, 0, 1, 1], [], []>} : vector<8x32xbf16>, vector<32x128xbf16>, vector<8x128xf32> -> vector<8x128xf32>
    %220 = arith.addf %216, %219 : vector<8x128xf32>
    %221 = arith.negf %220 : vector<8x128xf32>
    %222 = math.exp %221 : vector<8x128xf32>
    %cst_78 = arith.constant 1.000000e+00 : f32
    %223 = vector.broadcast %cst_78 : f32 to vector<8x128xf32>
    %224 = arith.addf %223, %222 : vector<8x128xf32>
    %225 = arith.divf %223, %224 : vector<8x128xf32>
    %226 = math.tanh %220 : vector<8x128xf32>
    %227 = vector.extract_strided_slice %225 {offsets = [0, 0], sizes = [8, 32], strides = [1, 1]} : vector<8x128xf32> to vector<8x32xf32>
    %228 = vector.extract_strided_slice %225 {offsets = [0, 32], sizes = [8, 32], strides = [1, 1]} : vector<8x128xf32> to vector<8x32xf32>
    %229 = vector.extract_strided_slice %226 {offsets = [0, 64], sizes = [8, 32], strides = [1, 1]} : vector<8x128xf32> to vector<8x32xf32>
    %230 = vector.extract_strided_slice %225 {offsets = [0, 96], sizes = [8, 32], strides = [1, 1]} : vector<8x128xf32> to vector<8x32xf32>
    %231 = arith.mulf %228, %205 : vector<8x32xf32>
    %232 = arith.mulf %227, %229 : vector<8x32xf32>
    %233 = arith.addf %231, %232 : vector<8x32xf32>
    %234 = math.tanh %233 : vector<8x32xf32>
    %235 = arith.mulf %230, %234 : vector<8x32xf32>
    %236 = arith.truncf %235 : vector<8x32xf32> to vector<8x32xbf16>
    %237 = arith.index_cast %c7_i32 : i32 to index
    %c0_79 = arith.constant 0 : index
    %c0_80 = arith.constant 0 : index
    %238 = vector.load %arg13[%237, %c0_79, %c0_80] : memref<8x8x32xbf16, #tpu.memory_space<vmem>>, vector<1x8x32xbf16>
    %239 = vector.shape_cast %238 : vector<1x8x32xbf16> to vector<8x32xbf16>
    %240 = vector.shape_cast %236 : vector<8x32xbf16> to vector<1x8x32xbf16>
    tpu.vector_store %arg13[%237, %c0_79, %c0_80], %240 {strides = array<i32>} : memref<8x8x32xbf16, #tpu.memory_space<vmem>>, vector<1x8x32xbf16>,
    %c8_i32 = arith.constant 8 : i32
    %c0_81 = arith.constant 0 : index
    %c0_82 = arith.constant 0 : index
    %c0_83 = arith.constant 0 : index
    %241 = vector.load %arg14[%c0_81, %c0_82, %c0_83] : memref<2x8x32xf32, #tpu.memory_space<vmem>>, vector<1x8x32xf32>
    %242 = vector.shape_cast %241 : vector<1x8x32xf32> to vector<8x32xf32>
    %243 = vector.shape_cast %235 : vector<8x32xf32> to vector<1x8x32xf32>
    tpu.vector_store %arg14[%c0_81, %c0_82, %c0_83], %243 {strides = array<i32>} : memref<2x8x32xf32, #tpu.memory_space<vmem>>, vector<1x8x32xf32>,
    %c0_84 = arith.constant 0 : index
    %c0_85 = arith.constant 0 : index
    %c0_86 = arith.constant 0 : index
    %244 = vector.load %arg15[%c0_84, %c0_85, %c0_86] : memref<2x8x32xf32, #tpu.memory_space<vmem>>, vector<1x8x32xf32>
    %245 = vector.shape_cast %244 : vector<1x8x32xf32> to vector<8x32xf32>
    %246 = vector.shape_cast %233 : vector<8x32xf32> to vector<1x8x32xf32>
    tpu.vector_store %arg15[%c0_84, %c0_85, %c0_86], %246 {strides = array<i32>} : memref<2x8x32xf32, #tpu.memory_space<vmem>>, vector<1x8x32xf32>,
    %c0_87 = arith.constant 0 : index
    %c0_88 = arith.constant 0 : index
    %c0_89 = arith.constant 0 : index
    %247 = vector.load %arg13[%c0_87, %c0_88, %c0_89] : memref<8x8x32xbf16, #tpu.memory_space<vmem>>, vector<8x8x32xbf16>
    %248 = vector.shape_cast %247 : vector<8x8x32xbf16> to vector<64x32xbf16>
    %c0_90 = arith.constant 0 : index
    %c0_91 = arith.constant 0 : index
    %249 = vector.load %arg6[%c0_90, %c0_91] : memref<32x128xbf16, #tpu.memory_space<vmem>>, vector<32x128xbf16>
    %cst_92 = arith.constant dense<0.000000e+00> : vector<64x128xf32>
    %250 = tpu.matmul %248, %249, %cst_92 {dimension_numbers = #tpu.dot_dimension_numbers<[1], [0], [0], [1], [0, 0, 1, 1], [], []>} : vector<64x32xbf16>, vector<32x128xbf16>, vector<64x128xf32> -> vector<64x128xf32>
    %c0_93 = arith.constant 0 : index
    %c0_94 = arith.constant 0 : index
    %251 = vector.load %arg8[%c0_93, %c0_94] : memref<1x128xf32, #tpu.memory_space<vmem>>, vector<1x128xf32>
    %252 = vector.broadcast %251 : vector<1x128xf32> to vector<64x128xf32>
    %253 = arith.addf %250, %252 : vector<64x128xf32>
    %254 = vector.shape_cast %253 : vector<64x128xf32> to vector<8x8x128xf32>
    %255 = arith.truncf %254 : vector<8x8x128xf32> to vector<8x8x128xbf16>
    %c0_95 = arith.constant 0 : index
    %c0_96 = arith.constant 0 : index
    %c0_97 = arith.constant 0 : index
    %256 = vector.load %arg12[%c0_95, %c0_96, %c0_97] : memref<8x8x128xbf16, #tpu.memory_space<vmem>>, vector<8x8x128xbf16>
    tpu.vector_store %arg12[%c0_95, %c0_96, %c0_97], %255 {strides = array<i32>} : memref<8x8x128xbf16, #tpu.memory_space<vmem>>, vector<8x8x128xbf16>,
    %c1 = arith.constant 1 : index
    %c0_98 = arith.constant 0 : index
    %c0_99 = arith.constant 0 : index
    %257 = vector.load %arg14[%c1, %c0_98, %c0_99] : memref<2x8x32xf32, #tpu.memory_space<vmem>>, vector<1x8x32xf32>
    %258 = vector.shape_cast %257 : vector<1x8x32xf32> to vector<8x32xf32>
    %c1_100 = arith.constant 1 : index
    %c0_101 = arith.constant 0 : index
    %c0_102 = arith.constant 0 : index
    %259 = vector.load %arg15[%c1_100, %c0_101, %c0_102] : memref<2x8x32xf32, #tpu.memory_space<vmem>>, vector<1x8x32xf32>
    %260 = vector.shape_cast %259 : vector<1x8x32xf32> to vector<8x32xf32>
    %c0_i32_103 = arith.constant 0 : i32
    %261 = arith.index_cast %c0_i32_103 : i32 to index
    %c0_104 = arith.constant 0 : index
    %c0_105 = arith.constant 0 : index
    %262 = vector.load %arg12[%261, %c0_104, %c0_105] : memref<8x8x128xbf16, #tpu.memory_space<vmem>>, vector<1x8x128xbf16>
    %263 = vector.shape_cast %262 : vector<1x8x128xbf16> to vector<8x128xbf16>
    %264 = arith.extf %263 : vector<8x128xbf16> to vector<8x128xf32>
    %265 = arith.truncf %258 : vector<8x32xf32> to vector<8x32xbf16>
    %c0_106 = arith.constant 0 : index
    %c0_107 = arith.constant 0 : index
    %266 = vector.load %arg7[%c0_106, %c0_107] : memref<32x128xbf16, #tpu.memory_space<vmem>>, vector<32x128xbf16>
    %cst_108 = arith.constant dense<0.000000e+00> : vector<8x128xf32>
    %267 = tpu.matmul %265, %266, %cst_108 {dimension_numbers = #tpu.dot_dimension_numbers<[1], [0], [0], [1], [0, 0, 1, 1], [], []>} : vector<8x32xbf16>, vector<32x128xbf16>, vector<8x128xf32> -> vector<8x128xf32>
    %268 = arith.addf %264, %267 : vector<8x128xf32>
    %269 = arith.negf %268 : vector<8x128xf32>
    %270 = math.exp %269 : vector<8x128xf32>
    %cst_109 = arith.constant 1.000000e+00 : f32
    %271 = vector.broadcast %cst_109 : f32 to vector<8x128xf32>
    %272 = arith.addf %271, %270 : vector<8x128xf32>
    %273 = arith.divf %271, %272 : vector<8x128xf32>
    %274 = math.tanh %268 : vector<8x128xf32>
    %275 = vector.extract_strided_slice %273 {offsets = [0, 0], sizes = [8, 32], strides = [1, 1]} : vector<8x128xf32> to vector<8x32xf32>
    %276 = vector.extract_strided_slice %273 {offsets = [0, 32], sizes = [8, 32], strides = [1, 1]} : vector<8x128xf32> to vector<8x32xf32>
    %277 = vector.extract_strided_slice %274 {offsets = [0, 64], sizes = [8, 32], strides = [1, 1]} : vector<8x128xf32> to vector<8x32xf32>
    %278 = vector.extract_strided_slice %273 {offsets = [0, 96], sizes = [8, 32], strides = [1, 1]} : vector<8x128xf32> to vector<8x32xf32>
    %279 = arith.mulf %276, %260 : vector<8x32xf32>
    %280 = arith.mulf %275, %277 : vector<8x32xf32>
    %281 = arith.addf %279, %280 : vector<8x32xf32>
    %282 = math.tanh %281 : vector<8x32xf32>
    %283 = arith.mulf %278, %282 : vector<8x32xf32>
    %c1_i32_110 = arith.constant 1 : i32
    %284 = arith.index_cast %c1_i32_110 : i32 to index
    %c0_111 = arith.constant 0 : index
    %c0_112 = arith.constant 0 : index
    %285 = vector.load %arg12[%284, %c0_111, %c0_112] : memref<8x8x128xbf16, #tpu.memory_space<vmem>>, vector<1x8x128xbf16>
    %286 = vector.shape_cast %285 : vector<1x8x128xbf16> to vector<8x128xbf16>
    %287 = arith.extf %286 : vector<8x128xbf16> to vector<8x128xf32>
    %288 = arith.truncf %283 : vector<8x32xf32> to vector<8x32xbf16>
    %c0_113 = arith.constant 0 : index
    %c0_114 = arith.constant 0 : index
    %289 = vector.load %arg7[%c0_113, %c0_114] : memref<32x128xbf16, #tpu.memory_space<vmem>>, vector<32x128xbf16>
    %cst_115 = arith.constant dense<0.000000e+00> : vector<8x128xf32>
    %290 = tpu.matmul %288, %289, %cst_115 {dimension_numbers = #tpu.dot_dimension_numbers<[1], [0], [0], [1], [0, 0, 1, 1], [], []>} : vector<8x32xbf16>, vector<32x128xbf16>, vector<8x128xf32> -> vector<8x128xf32>
    %291 = arith.addf %287, %290 : vector<8x128xf32>
    %292 = arith.negf %291 : vector<8x128xf32>
    %293 = math.exp %292 : vector<8x128xf32>
    %cst_116 = arith.constant 1.000000e+00 : f32
    %294 = vector.broadcast %cst_116 : f32 to vector<8x128xf32>
    %295 = arith.addf %294, %293 : vector<8x128xf32>
    %296 = arith.divf %294, %295 : vector<8x128xf32>
    %297 = math.tanh %291 : vector<8x128xf32>
    %298 = vector.extract_strided_slice %296 {offsets = [0, 0], sizes = [8, 32], strides = [1, 1]} : vector<8x128xf32> to vector<8x32xf32>
    %299 = vector.extract_strided_slice %296 {offsets = [0, 32], sizes = [8, 32], strides = [1, 1]} : vector<8x128xf32> to vector<8x32xf32>
    %300 = vector.extract_strided_slice %297 {offsets = [0, 64], sizes = [8, 32], strides = [1, 1]} : vector<8x128xf32> to vector<8x32xf32>
    %301 = vector.extract_strided_slice %296 {offsets = [0, 96], sizes = [8, 32], strides = [1, 1]} : vector<8x128xf32> to vector<8x32xf32>
    %302 = arith.mulf %299, %281 : vector<8x32xf32>
    %303 = arith.mulf %298, %300 : vector<8x32xf32>
    %304 = arith.addf %302, %303 : vector<8x32xf32>
    %305 = math.tanh %304 : vector<8x32xf32>
    %306 = arith.mulf %301, %305 : vector<8x32xf32>
    %c2_i32_117 = arith.constant 2 : i32
    %307 = arith.index_cast %c2_i32_117 : i32 to index
    %c0_118 = arith.constant 0 : index
    %c0_119 = arith.constant 0 : index
    %308 = vector.load %arg12[%307, %c0_118, %c0_119] : memref<8x8x128xbf16, #tpu.memory_space<vmem>>, vector<1x8x128xbf16>
    %309 = vector.shape_cast %308 : vector<1x8x128xbf16> to vector<8x128xbf16>
    %310 = arith.extf %309 : vector<8x128xbf16> to vector<8x128xf32>
    %311 = arith.truncf %306 : vector<8x32xf32> to vector<8x32xbf16>
    %c0_120 = arith.constant 0 : index
    %c0_121 = arith.constant 0 : index
    %312 = vector.load %arg7[%c0_120, %c0_121] : memref<32x128xbf16, #tpu.memory_space<vmem>>, vector<32x128xbf16>
    %cst_122 = arith.constant dense<0.000000e+00> : vector<8x128xf32>
    %313 = tpu.matmul %311, %312, %cst_122 {dimension_numbers = #tpu.dot_dimension_numbers<[1], [0], [0], [1], [0, 0, 1, 1], [], []>} : vector<8x32xbf16>, vector<32x128xbf16>, vector<8x128xf32> -> vector<8x128xf32>
    %314 = arith.addf %310, %313 : vector<8x128xf32>
    %315 = arith.negf %314 : vector<8x128xf32>
    %316 = math.exp %315 : vector<8x128xf32>
    %cst_123 = arith.constant 1.000000e+00 : f32
    %317 = vector.broadcast %cst_123 : f32 to vector<8x128xf32>
    %318 = arith.addf %317, %316 : vector<8x128xf32>
    %319 = arith.divf %317, %318 : vector<8x128xf32>
    %320 = math.tanh %314 : vector<8x128xf32>
    %321 = vector.extract_strided_slice %319 {offsets = [0, 0], sizes = [8, 32], strides = [1, 1]} : vector<8x128xf32> to vector<8x32xf32>
    %322 = vector.extract_strided_slice %319 {offsets = [0, 32], sizes = [8, 32], strides = [1, 1]} : vector<8x128xf32> to vector<8x32xf32>
    %323 = vector.extract_strided_slice %320 {offsets = [0, 64], sizes = [8, 32], strides = [1, 1]} : vector<8x128xf32> to vector<8x32xf32>
    %324 = vector.extract_strided_slice %319 {offsets = [0, 96], sizes = [8, 32], strides = [1, 1]} : vector<8x128xf32> to vector<8x32xf32>
    %325 = arith.mulf %322, %304 : vector<8x32xf32>
    %326 = arith.mulf %321, %323 : vector<8x32xf32>
    %327 = arith.addf %325, %326 : vector<8x32xf32>
    %328 = math.tanh %327 : vector<8x32xf32>
    %329 = arith.mulf %324, %328 : vector<8x32xf32>
    %c3_i32_124 = arith.constant 3 : i32
    %330 = arith.index_cast %c3_i32_124 : i32 to index
    %c0_125 = arith.constant 0 : index
    %c0_126 = arith.constant 0 : index
    %331 = vector.load %arg12[%330, %c0_125, %c0_126] : memref<8x8x128xbf16, #tpu.memory_space<vmem>>, vector<1x8x128xbf16>
    %332 = vector.shape_cast %331 : vector<1x8x128xbf16> to vector<8x128xbf16>
    %333 = arith.extf %332 : vector<8x128xbf16> to vector<8x128xf32>
    %334 = arith.truncf %329 : vector<8x32xf32> to vector<8x32xbf16>
    %c0_127 = arith.constant 0 : index
    %c0_128 = arith.constant 0 : index
    %335 = vector.load %arg7[%c0_127, %c0_128] : memref<32x128xbf16, #tpu.memory_space<vmem>>, vector<32x128xbf16>
    %cst_129 = arith.constant dense<0.000000e+00> : vector<8x128xf32>
    %336 = tpu.matmul %334, %335, %cst_129 {dimension_numbers = #tpu.dot_dimension_numbers<[1], [0], [0], [1], [0, 0, 1, 1], [], []>} : vector<8x32xbf16>, vector<32x128xbf16>, vector<8x128xf32> -> vector<8x128xf32>
    %337 = arith.addf %333, %336 : vector<8x128xf32>
    %338 = arith.negf %337 : vector<8x128xf32>
    %339 = math.exp %338 : vector<8x128xf32>
    %cst_130 = arith.constant 1.000000e+00 : f32
    %340 = vector.broadcast %cst_130 : f32 to vector<8x128xf32>
    %341 = arith.addf %340, %339 : vector<8x128xf32>
    %342 = arith.divf %340, %341 : vector<8x128xf32>
    %343 = math.tanh %337 : vector<8x128xf32>
    %344 = vector.extract_strided_slice %342 {offsets = [0, 0], sizes = [8, 32], strides = [1, 1]} : vector<8x128xf32> to vector<8x32xf32>
    %345 = vector.extract_strided_slice %342 {offsets = [0, 32], sizes = [8, 32], strides = [1, 1]} : vector<8x128xf32> to vector<8x32xf32>
    %346 = vector.extract_strided_slice %343 {offsets = [0, 64], sizes = [8, 32], strides = [1, 1]} : vector<8x128xf32> to vector<8x32xf32>
    %347 = vector.extract_strided_slice %342 {offsets = [0, 96], sizes = [8, 32], strides = [1, 1]} : vector<8x128xf32> to vector<8x32xf32>
    %348 = arith.mulf %345, %327 : vector<8x32xf32>
    %349 = arith.mulf %344, %346 : vector<8x32xf32>
    %350 = arith.addf %348, %349 : vector<8x32xf32>
    %351 = math.tanh %350 : vector<8x32xf32>
    %352 = arith.mulf %347, %351 : vector<8x32xf32>
    %c4_i32_131 = arith.constant 4 : i32
    %353 = arith.index_cast %c4_i32_131 : i32 to index
    %c0_132 = arith.constant 0 : index
    %c0_133 = arith.constant 0 : index
    %354 = vector.load %arg12[%353, %c0_132, %c0_133] : memref<8x8x128xbf16, #tpu.memory_space<vmem>>, vector<1x8x128xbf16>
    %355 = vector.shape_cast %354 : vector<1x8x128xbf16> to vector<8x128xbf16>
    %356 = arith.extf %355 : vector<8x128xbf16> to vector<8x128xf32>
    %357 = arith.truncf %352 : vector<8x32xf32> to vector<8x32xbf16>
    %c0_134 = arith.constant 0 : index
    %c0_135 = arith.constant 0 : index
    %358 = vector.load %arg7[%c0_134, %c0_135] : memref<32x128xbf16, #tpu.memory_space<vmem>>, vector<32x128xbf16>
    %cst_136 = arith.constant dense<0.000000e+00> : vector<8x128xf32>
    %359 = tpu.matmul %357, %358, %cst_136 {dimension_numbers = #tpu.dot_dimension_numbers<[1], [0], [0], [1], [0, 0, 1, 1], [], []>} : vector<8x32xbf16>, vector<32x128xbf16>, vector<8x128xf32> -> vector<8x128xf32>
    %360 = arith.addf %356, %359 : vector<8x128xf32>
    %361 = arith.negf %360 : vector<8x128xf32>
    %362 = math.exp %361 : vector<8x128xf32>
    %cst_137 = arith.constant 1.000000e+00 : f32
    %363 = vector.broadcast %cst_137 : f32 to vector<8x128xf32>
    %364 = arith.addf %363, %362 : vector<8x128xf32>
    %365 = arith.divf %363, %364 : vector<8x128xf32>
    %366 = math.tanh %360 : vector<8x128xf32>
    %367 = vector.extract_strided_slice %365 {offsets = [0, 0], sizes = [8, 32], strides = [1, 1]} : vector<8x128xf32> to vector<8x32xf32>
    %368 = vector.extract_strided_slice %365 {offsets = [0, 32], sizes = [8, 32], strides = [1, 1]} : vector<8x128xf32> to vector<8x32xf32>
    %369 = vector.extract_strided_slice %366 {offsets = [0, 64], sizes = [8, 32], strides = [1, 1]} : vector<8x128xf32> to vector<8x32xf32>
    %370 = vector.extract_strided_slice %365 {offsets = [0, 96], sizes = [8, 32], strides = [1, 1]} : vector<8x128xf32> to vector<8x32xf32>
    %371 = arith.mulf %368, %350 : vector<8x32xf32>
    %372 = arith.mulf %367, %369 : vector<8x32xf32>
    %373 = arith.addf %371, %372 : vector<8x32xf32>
    %374 = math.tanh %373 : vector<8x32xf32>
    %375 = arith.mulf %370, %374 : vector<8x32xf32>
    %c5_i32_138 = arith.constant 5 : i32
    %376 = arith.index_cast %c5_i32_138 : i32 to index
    %c0_139 = arith.constant 0 : index
    %c0_140 = arith.constant 0 : index
    %377 = vector.load %arg12[%376, %c0_139, %c0_140] : memref<8x8x128xbf16, #tpu.memory_space<vmem>>, vector<1x8x128xbf16>
    %378 = vector.shape_cast %377 : vector<1x8x128xbf16> to vector<8x128xbf16>
    %379 = arith.extf %378 : vector<8x128xbf16> to vector<8x128xf32>
    %380 = arith.truncf %375 : vector<8x32xf32> to vector<8x32xbf16>
    %c0_141 = arith.constant 0 : index
    %c0_142 = arith.constant 0 : index
    %381 = vector.load %arg7[%c0_141, %c0_142] : memref<32x128xbf16, #tpu.memory_space<vmem>>, vector<32x128xbf16>
    %cst_143 = arith.constant dense<0.000000e+00> : vector<8x128xf32>
    %382 = tpu.matmul %380, %381, %cst_143 {dimension_numbers = #tpu.dot_dimension_numbers<[1], [0], [0], [1], [0, 0, 1, 1], [], []>} : vector<8x32xbf16>, vector<32x128xbf16>, vector<8x128xf32> -> vector<8x128xf32>
    %383 = arith.addf %379, %382 : vector<8x128xf32>
    %384 = arith.negf %383 : vector<8x128xf32>
    %385 = math.exp %384 : vector<8x128xf32>
    %cst_144 = arith.constant 1.000000e+00 : f32
    %386 = vector.broadcast %cst_144 : f32 to vector<8x128xf32>
    %387 = arith.addf %386, %385 : vector<8x128xf32>
    %388 = arith.divf %386, %387 : vector<8x128xf32>
    %389 = math.tanh %383 : vector<8x128xf32>
    %390 = vector.extract_strided_slice %388 {offsets = [0, 0], sizes = [8, 32], strides = [1, 1]} : vector<8x128xf32> to vector<8x32xf32>
    %391 = vector.extract_strided_slice %388 {offsets = [0, 32], sizes = [8, 32], strides = [1, 1]} : vector<8x128xf32> to vector<8x32xf32>
    %392 = vector.extract_strided_slice %389 {offsets = [0, 64], sizes = [8, 32], strides = [1, 1]} : vector<8x128xf32> to vector<8x32xf32>
    %393 = vector.extract_strided_slice %388 {offsets = [0, 96], sizes = [8, 32], strides = [1, 1]} : vector<8x128xf32> to vector<8x32xf32>
    %394 = arith.mulf %391, %373 : vector<8x32xf32>
    %395 = arith.mulf %390, %392 : vector<8x32xf32>
    %396 = arith.addf %394, %395 : vector<8x32xf32>
    %397 = math.tanh %396 : vector<8x32xf32>
    %398 = arith.mulf %393, %397 : vector<8x32xf32>
    %c6_i32_145 = arith.constant 6 : i32
    %399 = arith.index_cast %c6_i32_145 : i32 to index
    %c0_146 = arith.constant 0 : index
    %c0_147 = arith.constant 0 : index
    %400 = vector.load %arg12[%399, %c0_146, %c0_147] : memref<8x8x128xbf16, #tpu.memory_space<vmem>>, vector<1x8x128xbf16>
    %401 = vector.shape_cast %400 : vector<1x8x128xbf16> to vector<8x128xbf16>
    %402 = arith.extf %401 : vector<8x128xbf16> to vector<8x128xf32>
    %403 = arith.truncf %398 : vector<8x32xf32> to vector<8x32xbf16>
    %c0_148 = arith.constant 0 : index
    %c0_149 = arith.constant 0 : index
    %404 = vector.load %arg7[%c0_148, %c0_149] : memref<32x128xbf16, #tpu.memory_space<vmem>>, vector<32x128xbf16>
    %cst_150 = arith.constant dense<0.000000e+00> : vector<8x128xf32>
    %405 = tpu.matmul %403, %404, %cst_150 {dimension_numbers = #tpu.dot_dimension_numbers<[1], [0], [0], [1], [0, 0, 1, 1], [], []>} : vector<8x32xbf16>, vector<32x128xbf16>, vector<8x128xf32> -> vector<8x128xf32>
    %406 = arith.addf %402, %405 : vector<8x128xf32>
    %407 = arith.negf %406 : vector<8x128xf32>
    %408 = math.exp %407 : vector<8x128xf32>
    %cst_151 = arith.constant 1.000000e+00 : f32
    %409 = vector.broadcast %cst_151 : f32 to vector<8x128xf32>
    %410 = arith.addf %409, %408 : vector<8x128xf32>
    %411 = arith.divf %409, %410 : vector<8x128xf32>
    %412 = math.tanh %406 : vector<8x128xf32>
    %413 = vector.extract_strided_slice %411 {offsets = [0, 0], sizes = [8, 32], strides = [1, 1]} : vector<8x128xf32> to vector<8x32xf32>
    %414 = vector.extract_strided_slice %411 {offsets = [0, 32], sizes = [8, 32], strides = [1, 1]} : vector<8x128xf32> to vector<8x32xf32>
    %415 = vector.extract_strided_slice %412 {offsets = [0, 64], sizes = [8, 32], strides = [1, 1]} : vector<8x128xf32> to vector<8x32xf32>
    %416 = vector.extract_strided_slice %411 {offsets = [0, 96], sizes = [8, 32], strides = [1, 1]} : vector<8x128xf32> to vector<8x32xf32>
    %417 = arith.mulf %414, %396 : vector<8x32xf32>
    %418 = arith.mulf %413, %415 : vector<8x32xf32>
    %419 = arith.addf %417, %418 : vector<8x32xf32>
    %420 = math.tanh %419 : vector<8x32xf32>
    %421 = arith.mulf %416, %420 : vector<8x32xf32>
    %c7_i32_152 = arith.constant 7 : i32
    %422 = arith.index_cast %c7_i32_152 : i32 to index
    %c0_153 = arith.constant 0 : index
    %c0_154 = arith.constant 0 : index
    %423 = vector.load %arg12[%422, %c0_153, %c0_154] : memref<8x8x128xbf16, #tpu.memory_space<vmem>>, vector<1x8x128xbf16>
    %424 = vector.shape_cast %423 : vector<1x8x128xbf16> to vector<8x128xbf16>
    %425 = arith.extf %424 : vector<8x128xbf16> to vector<8x128xf32>
    %426 = arith.truncf %421 : vector<8x32xf32> to vector<8x32xbf16>
    %c0_155 = arith.constant 0 : index
    %c0_156 = arith.constant 0 : index
    %427 = vector.load %arg7[%c0_155, %c0_156] : memref<32x128xbf16, #tpu.memory_space<vmem>>, vector<32x128xbf16>
    %cst_157 = arith.constant dense<0.000000e+00> : vector<8x128xf32>
    %428 = tpu.matmul %426, %427, %cst_157 {dimension_numbers = #tpu.dot_dimension_numbers<[1], [0], [0], [1], [0, 0, 1, 1], [], []>} : vector<8x32xbf16>, vector<32x128xbf16>, vector<8x128xf32> -> vector<8x128xf32>
    %429 = arith.addf %425, %428 : vector<8x128xf32>
    %430 = arith.negf %429 : vector<8x128xf32>
    %431 = math.exp %430 : vector<8x128xf32>
    %cst_158 = arith.constant 1.000000e+00 : f32
    %432 = vector.broadcast %cst_158 : f32 to vector<8x128xf32>
    %433 = arith.addf %432, %431 : vector<8x128xf32>
    %434 = arith.divf %432, %433 : vector<8x128xf32>
    %435 = math.tanh %429 : vector<8x128xf32>
    %436 = vector.extract_strided_slice %434 {offsets = [0, 0], sizes = [8, 32], strides = [1, 1]} : vector<8x128xf32> to vector<8x32xf32>
    %437 = vector.extract_strided_slice %434 {offsets = [0, 32], sizes = [8, 32], strides = [1, 1]} : vector<8x128xf32> to vector<8x32xf32>
    %438 = vector.extract_strided_slice %435 {offsets = [0, 64], sizes = [8, 32], strides = [1, 1]} : vector<8x128xf32> to vector<8x32xf32>
    %439 = vector.extract_strided_slice %434 {offsets = [0, 96], sizes = [8, 32], strides = [1, 1]} : vector<8x128xf32> to vector<8x32xf32>
    %440 = arith.mulf %437, %419 : vector<8x32xf32>
    %441 = arith.mulf %436, %438 : vector<8x32xf32>
    %442 = arith.addf %440, %441 : vector<8x32xf32>
    %443 = math.tanh %442 : vector<8x32xf32>
    %444 = arith.mulf %439, %443 : vector<8x32xf32>
    %c8_i32_159 = arith.constant 8 : i32
    %c1_160 = arith.constant 1 : index
    %c0_161 = arith.constant 0 : index
    %c0_162 = arith.constant 0 : index
    %445 = vector.load %arg14[%c1_160, %c0_161, %c0_162] : memref<2x8x32xf32, #tpu.memory_space<vmem>>, vector<1x8x32xf32>
    %446 = vector.shape_cast %445 : vector<1x8x32xf32> to vector<8x32xf32>
    %447 = vector.shape_cast %444 : vector<8x32xf32> to vector<1x8x32xf32>
    tpu.vector_store %arg14[%c1_160, %c0_161, %c0_162], %447 {strides = array<i32>} : memref<2x8x32xf32, #tpu.memory_space<vmem>>, vector<1x8x32xf32>,
    %c1_163 = arith.constant 1 : index
    %c0_164 = arith.constant 0 : index
    %c0_165 = arith.constant 0 : index
    %448 = vector.load %arg15[%c1_163, %c0_164, %c0_165] : memref<2x8x32xf32, #tpu.memory_space<vmem>>, vector<1x8x32xf32>
    %449 = vector.shape_cast %448 : vector<1x8x32xf32> to vector<8x32xf32>
    %450 = vector.shape_cast %442 : vector<8x32xf32> to vector<1x8x32xf32>
    tpu.vector_store %arg15[%c1_163, %c0_164, %c0_165], %450 {strides = array<i32>} : memref<2x8x32xf32, #tpu.memory_space<vmem>>, vector<1x8x32xf32>,
    %c0_i32_166 = arith.constant 0 : i32
    %451 = arith.cmpi eq, %arg1, %c0_i32_166 : i32
    %452 = arith.extui %451 : i1 to i32
    %c0_i32_167 = arith.constant 0 : i32
    %453 = arith.cmpi ne, %452, %c0_i32_167 : i32
    scf.if %453 {
      %c1_168 = arith.constant 1 : index
      %c0_169 = arith.constant 0 : index
      %c0_170 = arith.constant 0 : index
      %454 = vector.load %arg14[%c1_168, %c0_169, %c0_170] : memref<2x8x32xf32, #tpu.memory_space<vmem>>, vector<1x8x32xf32>
      %455 = vector.shape_cast %454 : vector<1x8x32xf32> to vector<8x32xf32>
      %456 = arith.truncf %455 : vector<8x32xf32> to vector<8x32xbf16>
      %c0_171 = arith.constant 0 : index
      %c0_172 = arith.constant 0 : index
      %457 = vector.load %arg9[%c0_171, %c0_172] : memref<32x128xbf16, #tpu.memory_space<vmem>>, vector<32x128xbf16>
      %cst_173 = arith.constant dense<0.000000e+00> : vector<8x128xf32>
      %458 = tpu.matmul %456, %457, %cst_173 {dimension_numbers = #tpu.dot_dimension_numbers<[1], [0], [0], [1], [0, 0, 1, 1], [], []>} : vector<8x32xbf16>, vector<32x128xbf16>, vector<8x128xf32> -> vector<8x128xf32>
      %c0_174 = arith.constant 0 : index
      %c0_175 = arith.constant 0 : index
      %459 = vector.load %arg10[%c0_174, %c0_175] : memref<1x128xf32, #tpu.memory_space<vmem>>, vector<1x128xf32>
      %460 = vector.broadcast %459 : vector<1x128xf32> to vector<8x128xf32>
      %461 = arith.addf %458, %460 : vector<8x128xf32>
      %c0_176 = arith.constant 0 : index
      %c0_177 = arith.constant 0 : index
      %462 = vector.load %arg11[%c0_176, %c0_177] : memref<8x128xf32, #tpu.memory_space<vmem>>, vector<8x128xf32>
      tpu.vector_store %arg11[%c0_176, %c0_177], %461 {strides = array<i32>} : memref<8x128xf32, #tpu.memory_space<vmem>>, vector<8x128xf32>,
    } else {
    }
    return
  }
  func.func @transform_0(%arg0: i32, %arg1: i32) -> (i32, i32, i32) {
    %c0_i32 = arith.constant 0 : i32
    %c0_i32_0 = arith.constant 0 : i32
    return %arg1, %arg0, %c0_i32 : i32, i32, i32
  }
  func.func @transform_1(%arg0: i32, %arg1: i32) -> (i32, i32) {
    %c0_i32 = arith.constant 0 : i32
    %c0_i32_0 = arith.constant 0 : i32
    %c0_i32_1 = arith.constant 0 : i32
    return %c0_i32, %c0_i32_0 : i32, i32
  }
  func.func @transform_2(%arg0: i32, %arg1: i32) -> (i32, i32) {
    %c0_i32 = arith.constant 0 : i32
    %c0_i32_0 = arith.constant 0 : i32
    %c0_i32_1 = arith.constant 0 : i32
    return %c0_i32, %c0_i32_0 : i32, i32
  }
  func.func @transform_3(%arg0: i32, %arg1: i32) -> (i32, i32) {
    %c0_i32 = arith.constant 0 : i32
    %c0_i32_0 = arith.constant 0 : i32
    %c0_i32_1 = arith.constant 0 : i32
    return %c0_i32, %c0_i32_0 : i32, i32
  }
  func.func @transform_4(%arg0: i32, %arg1: i32) -> (i32, i32) {
    %c0_i32 = arith.constant 0 : i32
    %c0_i32_0 = arith.constant 0 : i32
    %c0_i32_1 = arith.constant 0 : i32
    return %c0_i32, %c0_i32_0 : i32, i32
  }
  func.func @transform_5(%arg0: i32, %arg1: i32) -> (i32, i32) {
    %c0_i32 = arith.constant 0 : i32
    %c0_i32_0 = arith.constant 0 : i32
    %c0_i32_1 = arith.constant 0 : i32
    return %c0_i32, %c0_i32_0 : i32, i32
  }
  func.func @transform_6(%arg0: i32, %arg1: i32) -> (i32, i32) {
    %c0_i32 = arith.constant 0 : i32
    %c0_i32_0 = arith.constant 0 : i32
    %c0_i32_1 = arith.constant 0 : i32
    return %c0_i32, %c0_i32_0 : i32, i32
  }
  func.func @transform_7(%arg0: i32, %arg1: i32) -> (i32, i32) {
    %c0_i32 = arith.constant 0 : i32
    %c0_i32_0 = arith.constant 0 : i32
    %c0_i32_1 = arith.constant 0 : i32
    return %c0_i32, %c0_i32_0 : i32, i32
  }
  func.func @transform_8(%arg0: i32, %arg1: i32) -> (i32, i32) {
    %c0_i32 = arith.constant 0 : i32
    %c0_i32_0 = arith.constant 0 : i32
    %c0_i32_1 = arith.constant 0 : i32
    return %c0_i32, %c0_i32_0 : i32, i32
  }
  func.func @transform_9(%arg0: i32, %arg1: i32) -> (i32, i32) {
    %c0_i32 = arith.constant 0 : i32
    %c0_i32_0 = arith.constant 0 : i32
    return %arg0, %c0_i32 : i32, i32
  }
}

</mosaic_0001>

<llo_original>
// kernel: tpu_custom_call.1
$region0: #{tpu_custom_call.1}
  #allocation0 [shape = 'u32[]', space=smem, size = 0x4, offset = 0x4, fixed_abs, tag = 'smem constant byte address 0x4 - core index']
  #allocation1 [shape = 'u32[144,128]{1,0:T(1,128)}', space=vmem, size = 0x12000, scoped, tag = 'internal scratch']
  #allocation2 [shape = 'bf16[8,8,128]{2,1,0:T(8,128)(2,1)}', space=vmem, size = 0x4000, scoped, tag = 'scratch operand']
  #allocation3 [shape = 'bf16[8,8,32]{2,1,0:T(8,128)(2,1)}', space=vmem, size = 0x4000, scoped, tag = 'scratch operand']
  #allocation4 [shape = 'f32[2,8,32]{2,1,0:T(8,128)}', space=vmem, size = 0x2000, scoped, tag = 'scratch operand']
  #allocation5 [shape = 'f32[2,8,32]{2,1,0:T(8,128)}', space=vmem, size = 0x2000, scoped, tag = 'scratch operand']
  %s0 = inlined_call_operand.hbm [shape: bf16[8,8,16], index: 0, kind: input, shape index: {}]
  %s1 = inlined_call_operand.hbm [shape: bf16[16,128], index: 1, kind: input, shape index: {}]
  %s2 = inlined_call_operand.hbm [shape: bf16[32,128], index: 2, kind: input, shape index: {}]
  %s3 = inlined_call_operand.vmem [shape: f32[1,128], index: 3, kind: input, shape index: {}]
  %s4 = inlined_call_operand.hbm [shape: bf16[32,128], index: 4, kind: input, shape index: {}]
  %s5 = inlined_call_operand.vmem [shape: bf16[32,128], index: 5, kind: input, shape index: {}]
  %s6 = inlined_call_operand.vmem [shape: f32[1,128], index: 6, kind: input, shape index: {}]
  %s7 = inlined_call_operand.hbm [shape: bf16[32,128], index: 7, kind: input, shape index: {}]
  %s8 = inlined_call_operand.vmem [shape: f32[1,128], index: 8, kind: input, shape index: {}]
  %s9 = inlined_call_operand.hbm [shape: f32[8,128], index: 9, kind: output, shape index: {}]
  %s10 = sld [smem:[#allocation0]]
  $region74: #{tpu_custom_call.1} parent=0
    _
  %s12 = ssub.s32 1, %s10
  %s13 = scalar_select 0, %s12, %s10
  $region1: #{tpu_custom_call.1} parent=0
    #allocation6 [shape = 'u8[16384]{0}', space=vmem, size = 0x4000, scoped, tag = 'input window, operand 0, single buffered']
    #allocation7 [shape = 's32[1]{0}', space=sflag, size = 0x4, scoped, tag = 'scoped memory for tpu_custom_call.1']
    #allocation8 [shape = 's32[1]{0}', space=sflag, size = 0x4, scoped, tag = 'scoped memory for tpu_custom_call.1']
    #allocation9 [shape = 'u8[4096]{0}', space=vmem, size = 0x1000, scoped, tag = 'input window, operand 1, single buffered']
    #allocation10 [shape = 's32[1]{0}', space=sflag, size = 0x4, scoped, tag = 'scoped memory for tpu_custom_call.1']
    #allocation11 [shape = 'u8[8192]{0}', space=vmem, size = 0x2000, scoped, tag = 'input window, operand 2, single buffered']
    #allocation12 [shape = 'u8[8192]{0}', space=vmem, size = 0x2000, scoped, tag = 'input window, operand 4, single buffered']
    #allocation13 [shape = 's32[1]{0}', space=sflag, size = 0x4, scoped, tag = 'scoped memory for tpu_custom_call.1']
    #allocation14 [shape = 'u8[8192]{0}', space=vmem, size = 0x2000, scoped, tag = 'input window, operand 7, single buffered']
    #allocation15 [shape = 'u8[4096]{0}', space=vmem, size = 0x1000, scoped, tag = 'output window, operand 0, single buffered']
    %14 = vsyncpa [#allocation7], 0
    %15 = vsyncpa [#allocation10], 0
    %16 = vsyncpa [#allocation13], 0
    %17 = vsyncpa [#allocation8], 0
    // Predicated region
    $region2: #{tpu_custom_call.1} parent=1 // pred_check
      _
    $region3: #{tpu_custom_call.1} parent=1 // pred_check_branch
      %19 = sbr.rel (0) target = $region5
    $region4: #{tpu_custom_call.1} parent=1 // pred_region
      %s21 = ssub.s32 512, 512
      %22 = vsyncadd [#allocation7], %s21
      %s23 = sshll.u32 [#allocation6], 4
      %s24 = int_to_ptr.vmem [resolvable:$true] %s23
      %29 = dma.hbm_to_vmem [thread:$0]  %s0, 512, %s24, [#allocation7], 64, 64, 4
    $region5: #{tpu_custom_call.1} parent=1 // pred_fallthru
      _
    // Predicated region
    $region6: #{tpu_custom_call.1} parent=1 // pred_check
      _
    $region7: #{tpu_custom_call.1} parent=1 // pred_check_branch
      %31 = sbr.rel (0) target = $region9
    $region8: #{tpu_custom_call.1} parent=1 // pred_region
      %s33 = ssub.s32 128, 128
      %34 = vsyncadd [#allocation10], %s33
      %s35 = sshll.u32 [#allocation9], 4
      %s36 = int_to_ptr.vmem [resolvable:$true] %s35
      %41 = dma.hbm_to_vmem [thread:$0]  %s1, 128, %s36, [#allocation10], 64, 64, 4
    $region9: #{tpu_custom_call.1} parent=1 // pred_fallthru
      _
    // Predicated region
    $region10: #{tpu_custom_call.1} parent=1 // pred_check
      _
    $region11: #{tpu_custom_call.1} parent=1 // pred_check_branch
      %43 = sbr.rel (0) target = $region13
    $region12: #{tpu_custom_call.1} parent=1 // pred_region
      %s45 = ssub.s32 256, 256
      %46 = vsyncadd [#allocation10], %s45
      %s47 = sshll.u32 [#allocation11], 4
      %s48 = int_to_ptr.vmem [resolvable:$true] %s47
      %53 = dma.hbm_to_vmem [thread:$0]  %s2, 256, %s48, [#allocation10], 64, 64, 4
    $region13: #{tpu_custom_call.1} parent=1 // pred_fallthru
      _
    // Predicated region
    $region14: #{tpu_custom_call.1} parent=1 // pred_check
      _
    $region15: #{tpu_custom_call.1} parent=1 // pred_check_branch
      %55 = sbr.rel (0) target = $region17
    $region16: #{tpu_custom_call.1} parent=1 // pred_region
      _
    $region17: #{tpu_custom_call.1} parent=1 // pred_fallthru
      _
    // Predicated region
    $region18: #{tpu_custom_call.1} parent=1 // pred_check
      _
    $region19: #{tpu_custom_call.1} parent=1 // pred_check_branch
      %57 = sbr.rel (0) target = $region21
    $region20: #{tpu_custom_call.1} parent=1 // pred_region
      %s59 = ssub.s32 256, 256
      %60 = vsyncadd [#allocation13], %s59
      %s61 = sshll.u32 [#allocation12], 4
      %s62 = int_to_ptr.vmem [resolvable:$true] %s61
      %67 = dma.hbm_to_vmem [thread:$0]  %s4, 256, %s62, [#allocation13], 64, 64, 4
    $region21: #{tpu_custom_call.1} parent=1 // pred_fallthru
      _
    // Predicated region
    $region22: #{tpu_custom_call.1} parent=1 // pred_check
      _
    $region23: #{tpu_custom_call.1} parent=1 // pred_check_branch
      %69 = sbr.rel (0) target = $region25
    $region24: #{tpu_custom_call.1} parent=1 // pred_region
      _
    $region25: #{tpu_custom_call.1} parent=1 // pred_fallthru
      _
    // Predicated region
    $region26: #{tpu_custom_call.1} parent=1 // pred_check
      _
    $region27: #{tpu_custom_call.1} parent=1 // pred_check_branch
      %71 = sbr.rel (0) target = $region29
    $region28: #{tpu_custom_call.1} parent=1 // pred_region
      _
    $region29: #{tpu_custom_call.1} parent=1 // pred_fallthru
      _
    // Predicated region
    $region30: #{tpu_custom_call.1} parent=1 // pred_check
      _
    $region31: #{tpu_custom_call.1} parent=1 // pred_check_branch
      %73 = sbr.rel (0) target = $region33
    $region32: #{tpu_custom_call.1} parent=1 // pred_region
      %s75 = ssub.s32 256, 256
      %76 = vsyncadd [#allocation13], %s75
      %s77 = sshll.u32 [#allocation14], 4
      %s78 = int_to_ptr.vmem [resolvable:$true] %s77
      %83 = dma.hbm_to_vmem [thread:$0]  %s7, 256, %s78, [#allocation13], 64, 64, 4
    $region33: #{tpu_custom_call.1} parent=1 // pred_fallthru
      _
    // Predicated region
    $region34: #{tpu_custom_call.1} parent=1 // pred_check
      _
    $region35: #{tpu_custom_call.1} parent=1 // pred_check_branch
      %85 = sbr.rel (0) target = $region37
    $region36: #{tpu_custom_call.1} parent=1 // pred_region
      _
    $region37: #{tpu_custom_call.1} parent=1 // pred_fallthru
      _
    // Predicated region
    $region38: #{tpu_custom_call.1} parent=1 // pred_check
      _
    $region39: #{tpu_custom_call.1} parent=1 // pred_check_branch
      %87 = sbr.rel (0) target = $region41
    $region40: #{tpu_custom_call.1} parent=1 // pred_region
      %88 = dma.done [#allocation7], 512
    $region41: #{tpu_custom_call.1} parent=1 // pred_fallthru
      _
    // Predicated region
    $region42: #{tpu_custom_call.1} parent=1 // pred_check
      _
    $region43: #{tpu_custom_call.1} parent=1 // pred_check_branch
      %90 = sbr.rel (0) target = $region45
    $region44: #{tpu_custom_call.1} parent=1 // pred_region
      %91 = dma.done [#allocation10], 128
    $region45: #{tpu_custom_call.1} parent=1 // pred_fallthru
      _
    // Predicated region
    $region46: #{tpu_custom_call.1} parent=1 // pred_check
      _
    $region47: #{tpu_custom_call.1} parent=1 // pred_check_branch
      %93 = sbr.rel (0) target = $region49
    $region48: #{tpu_custom_call.1} parent=1 // pred_region
      %94 = dma.done [#allocation10], 256
    $region49: #{tpu_custom_call.1} parent=1 // pred_fallthru
      _
    // Predicated region
    $region50: #{tpu_custom_call.1} parent=1 // pred_check
      _
    $region51: #{tpu_custom_call.1} parent=1 // pred_check_branch
      %96 = sbr.rel (0) target = $region53
    $region52: #{tpu_custom_call.1} parent=1 // pred_region
      %97 = dma.done [#allocation13], 256
    $region53: #{tpu_custom_call.1} parent=1 // pred_fallthru
      _
    // Predicated region
    $region54: #{tpu_custom_call.1} parent=1 // pred_check
      _
    $region55: #{tpu_custom_call.1} parent=1 // pred_check_branch
      %99 = sbr.rel (0) target = $region57
    $region56: #{tpu_custom_call.1} parent=1 // pred_region
      %100 = dma.done [#allocation13], 256
    $region57: #{tpu_custom_call.1} parent=1 // pred_fallthru
      _
    %p102 = scmp.eq.s32.totalorder 0, 0
    // Predicated region
    $region58: #{tpu_custom_call.1} parent=1 // pred_check
      %p103 = pneg %p102
    $region59: #{tpu_custom_call.1} parent=1 // pred_check_branch
      %105 = sbr.rel (%p103) target = $region61
    $region60: #{tpu_custom_call.1} parent=1 // pred_region
      %vm106 = vcmask 261120
      %107 = vst.msk [vmem:[#allocation4] sm:$0xff] %vm106, 0.0
      %108 = vst.msk [vmem:[#allocation4 + $0x8] sm:$0xff] %vm106, 0.0
      %109 = vst.msk [vmem:[#allocation5] sm:$0xff] %vm106, 0.0
      %110 = vst.msk [vmem:[#allocation5 + $0x8] sm:$0xff] %vm106, 0.0
    $region61: #{tpu_custom_call.1} parent=1 // pred_fallthru
      _
    %v111 = vld [vmem:[#allocation6] sm:$0xf]
    %v112 = vld [vmem:[#allocation6 + $0x4] sm:$0xf]
    %v113 = vld [vmem:[#allocation6 + $0x8] sm:$0xf]
    %v114 = vld [vmem:[#allocation6 + $0xc] sm:$0xf]
    %v115 = vld [vmem:[#allocation6 + $0x10] sm:$0xf]
    %v116 = vld [vmem:[#allocation6 + $0x14] sm:$0xf]
    %v117 = vld [vmem:[#allocation6 + $0x18] sm:$0xf]
    %v118 = vld [vmem:[#allocation6 + $0x1c] sm:$0xf]
    %v119 = vld [vmem:[#allocation9] sm:$0xf]
    %v120 = vld [vmem:[#allocation9 + $0x4] sm:$0xf]
    %v121 = vld [vmem:[%s3] sm:$0x1]
    %v123 = vlaneseq
    %v124 = vshrl.u32 %v123, 7
    %v125 = vsub.s32 0, %v124
    %v126 = vrot.slane %v121, %v125
    %v136 = vunpack.c.l.b16 %v111
    %v137 = vunpack.c.l.b16 %v112
    %v138 = vunpack.c.l.b16 %v113
    %v139 = vunpack.c.l.b16 %v114
    %v140 = vunpack.c.l.b16 %v115
    %v141 = vunpack.c.l.b16 %v116
    %v142 = vunpack.c.l.b16 %v117
    %v143 = vunpack.c.l.b16 %v118
    %v144 = vpack.c.b16 %v137, %v136
    %v145 = vpack.c.b16 %v139, %v138
    %v146 = vpack.c.b16 %v141, %v140
    %v147 = vpack.c.b16 %v143, %v142
    %v150 = vunpack.c.l.b16 %v119
    %v151 = vunpack.c.l.b16 %v120
    %v152 = vpack.c.b16 %v151, %v150
    %vm154 = vcmask 130048
    %v156 = vsel %vm154, %v144, 0
    %v159 = vsel %vm154, %v145, 0
    %v162 = vsel %vm154, %v146, 0
    %v165 = vsel %vm154, %v147, 0
    %167 = vmatprep.subr.bf16.mxu0 0
    %168 = vmatpush1.bf16.msra.mxu0 %v152
    %169 = vmatprep.subr.bf16.mxu0 0
    %170 = vmatpush1.bf16.msra.mxu0 0
    %171 = vmatprep.subr.bf16.mxu0 0
    %172 = vmatpush1.bf16.msra.mxu0 0
    %173 = vmatprep.subr.bf16.mxu0 0
    %174 = vmatpush1.bf16.msra.mxu0 0
    %175 = vmatprep.subr.bf16.mxu0 0
    %176 = vmatpush1.bf16.msra.mxu0 0
    %177 = vmatprep.subr.bf16.mxu0 0
    %178 = vmatpush1.bf16.msra.mxu0 0
    %179 = vmatprep.subr.bf16.mxu0 0
    %180 = vmatpush1.bf16.msra.mxu0 0
    %181 = vmatprep.subr.bf16.mxu0 0
    %182 = vmatpush1.bf16.msra.mxu0 0
    %183 = vmatprep.subr.bf16.mxu0 0
    %184 = vmatpush1.bf16.msra.mxu0 0
    %185 = vmatprep.subr.bf16.mxu0 0
    %186 = vmatpush1.bf16.msra.mxu0 0
    %187 = vmatprep.subr.bf16.mxu0 0
    %188 = vmatpush1.bf16.msra.mxu0 0
    %189 = vmatprep.subr.bf16.mxu0 0
    %190 = vmatpush1.bf16.msra.mxu0 0
    %191 = vmatprep.subr.bf16.mxu0 0
    %192 = vmatpush1.bf16.msra.mxu0 0
    %193 = vmatprep.subr.bf16.mxu0 0
    %194 = vmatpush1.bf16.msra.mxu0 0
    %195 = vmatprep.subr.bf16.mxu0 0
    %196 = vmatpush1.bf16.msra.mxu0 0
    %197 = vmatprep.subr.bf16.mxu0 0
    %198 = vmatpush1.bf16.msra.mxu0 0
    %199 = vmatprep.mubr.bf16.mxu0 0
    %200 = vmatmul.mubr.bf16.gmra.mrb[0].mxu0 %v156
    %v201 = vpop.f32.mrb[0].mxu0
    %v202 = vadd.f32 %v126, %v201
    %v203 = vpop.f32.mrb[0].mxu0
    %v204 = vpop.f32.mrb[0].mxu0
    %v205 = vadd.f32 %v126, %v204
    %v206 = vpop.f32.mrb[0].mxu0
    %207 = vmatprep.mubr.bf16.mxu0 0
    %208 = vmatmul.mubr.bf16.gmra.mrb[0].mxu0 %v159
    %v209 = vpop.f32.mrb[0].mxu0
    %v210 = vadd.f32 %v126, %v209
    %v211 = vpop.f32.mrb[0].mxu0
    %v212 = vpop.f32.mrb[0].mxu0
    %v213 = vadd.f32 %v126, %v212
    %v214 = vpop.f32.mrb[0].mxu0
    %215 = vmatprep.mubr.bf16.mxu0 0
    %216 = vmatmul.mubr.bf16.gmra.mrb[0].mxu0 %v162
    %v217 = vpop.f32.mrb[0].mxu0
    %v218 = vadd.f32 %v126, %v217
    %v219 = vpop.f32.mrb[0].mxu0
    %v220 = vpop.f32.mrb[0].mxu0
    %v221 = vadd.f32 %v126, %v220
    %v222 = vpop.f32.mrb[0].mxu0
    %223 = vmatprep.mubr.bf16.mxu0 0
    %224 = vmatmul.mubr.bf16.gmra.mrb[0].mxu0 %v165
    %v225 = vpop.f32.mrb[0].mxu0
    %v226 = vadd.f32 %v126, %v225
    %v227 = vpop.f32.mrb[0].mxu0
    %v228 = vpop.f32.mrb[0].mxu0
    %v229 = vadd.f32 %v126, %v228
    %v230 = vpop.f32.mrb[0].mxu0
    %231 = vdwg.mxu0
    %v232 = vpack.c.bf16 %v202, %v202
    %v233 = vpack.c.bf16 %v205, %v205
    %v234 = vpack.c.bf16 %v210, %v210
    %v235 = vpack.c.bf16 %v213, %v213
    %v236 = vpack.c.bf16 %v218, %v218
    %v237 = vpack.c.bf16 %v221, %v221
    %v238 = vpack.c.bf16 %v226, %v226
    %v239 = vpack.c.bf16 %v229, %v229
    %240 = vst [vmem:[#allocation2] sm:$0xf] %v232
    %241 = vst [vmem:[#allocation2 + $0x4] sm:$0xf] %v233
    %242 = vst [vmem:[#allocation2 + $0x8] sm:$0xf] %v234
    %243 = vst [vmem:[#allocation2 + $0xc] sm:$0xf] %v235
    %244 = vst [vmem:[#allocation2 + $0x10] sm:$0xf] %v236
    %245 = vst [vmem:[#allocation2 + $0x14] sm:$0xf] %v237
    %246 = vst [vmem:[#allocation2 + $0x18] sm:$0xf] %v238
    %247 = vst [vmem:[#allocation2 + $0x1c] sm:$0xf] %v239
    %v248 = vld [vmem:[#allocation4] sm:$0xff]
    %v249 = vld [vmem:[#allocation5] sm:$0xff]
    %v250 = vld [vmem:[#allocation2] sm:$0xf]
    %v251 = vunpack.c.l.bf16 %v250
    %v252 = vpack.c.bf16 %v248, %v248
    %v253 = vld [vmem:[#allocation11] sm:$0xf]
    %v254 = vld [vmem:[#allocation11 + $0x4] sm:$0xf]
    %v255 = vld [vmem:[#allocation11 + $0x8] sm:$0xf]
    %v256 = vld [vmem:[#allocation11 + $0xc] sm:$0xf]
    %v261 = vunpack.c.l.b16 %v253
    %v262 = vunpack.c.l.b16 %v254
    %v263 = vunpack.c.l.b16 %v255
    %v264 = vunpack.c.l.b16 %v256
    %v265 = vpack.c.b16 %v262, %v261
    %v266 = vpack.c.b16 %v264, %v263
    %vm269 = vcmask 261120
    %v271 = vsel %vm269, %v252, 0
    %273 = vmatprep.subr.bf16.mxu0 0
    %274 = vmatpush1.bf16.msra.mxu0 %v265
    %275 = vmatprep.subr.bf16.mxu0 0
    %276 = vmatpush1.bf16.msra.mxu0 %v266
    %277 = vmatprep.subr.bf16.mxu0 0
    %278 = vmatpush1.bf16.msra.mxu0 0
    %279 = vmatprep.subr.bf16.mxu0 0
    %280 = vmatpush1.bf16.msra.mxu0 0
    %281 = vmatprep.subr.bf16.mxu0 0
    %282 = vmatpush1.bf16.msra.mxu0 0
    %283 = vmatprep.subr.bf16.mxu0 0
    %284 = vmatpush1.bf16.msra.mxu0 0
    %285 = vmatprep.subr.bf16.mxu0 0
    %286 = vmatpush1.bf16.msra.mxu0 0
    %287 = vmatprep.subr.bf16.mxu0 0
    %288 = vmatpush1.bf16.msra.mxu0 0
    %289 = vmatprep.subr.bf16.mxu0 0
    %290 = vmatpush1.bf16.msra.mxu0 0
    %291 = vmatprep.subr.bf16.mxu0 0
    %292 = vmatpush1.bf16.msra.mxu0 0
    %293 = vmatprep.subr.bf16.mxu0 0
    %294 = vmatpush1.bf16.msra.mxu0 0
    %295 = vmatprep.subr.bf16.mxu0 0
    %296 = vmatpush1.bf16.msra.mxu0 0
    %297 = vmatprep.subr.bf16.mxu0 0
    %298 = vmatpush1.bf16.msra.mxu0 0
    %299 = vmatprep.subr.bf16.mxu0 0
    %300 = vmatpush1.bf16.msra.mxu0 0
    %301 = vmatprep.subr.bf16.mxu0 0
    %302 = vmatpush1.bf16.msra.mxu0 0
    %303 = vmatprep.subr.bf16.mxu0 0
    %304 = vmatpush1.bf16.msra.mxu0 0
    %305 = vmatprep.mubr.bf16.mxu0 0
    %306 = vmatmul.mubr.bf16.gmra.mrb[0].mxu0 %v271
    %v307 = vpop.f32.mrb[0].mxu0
    %v308 = vadd.f32 0.0, %v307
    %v309 = vpop.f32.mrb[0].mxu0
    %v310 = vpop.f32.mrb[0].mxu0
    %v311 = vpop.f32.mrb[0].mxu0
    %312 = vdwg.mxu0
    %v313 = vadd.f32 %v251, %v308
    %v314 = vxor.u32 %v313, 2147483648
    %v315 = vmul.f32 %v314, 1.442695
    %v316 = vpow.pop %v315
    %v317 = vadd.f32 %v316, 1.0
    %v318 = vrcp.pop %v317
    %v319 = vmul.f32 1.0, %v318
    %v320 = vtanh.pop %v313
    %322 = vrot.lane.b32.xlu0 %v249, 32
    %v323 = vpop.permute.xlu0 %322
    %v325 = vmul.f32 %v319, %v323
    %327 = vrot.lane.b32.xlu0 %v320, 64
    %v328 = vpop.permute.xlu0 %327
    %v330 = vmul.f32 %v319, %v328
    %332 = vrot.lane.b32.xlu0 %v330, 32
    %v333 = vpop.permute.xlu0 %332
    %v335 = vadd.f32 %v325, %v333
    %v336 = vtanh.pop %v335
    %338 = vrot.lane.b32.xlu0 %v336, 64
    %v339 = vpop.permute.xlu0 %338
    %v341 = vmul.f32 %v319, %v339
    %v342 = vpack.c.bf16 %v341, %v341
    %v344 = vunpack.c.l.b16 %v342
    %v345 = vpack.c.b16 %v344, %v344
    %346 = vrot.lane.b32.xlu0 %v345, 32
    %v347 = vpop.permute.xlu0 %346
    %vm349 = vcmask 257024
    %350 = vst.msk [vmem:[#allocation3] sm:$0xf] %vm349, %v347
    %s351 = scalar_lea.vmem [#allocation2], 4
    %v352 = vld [vmem:[%s351] sm:$0xf]
    %v353 = vunpack.c.l.bf16 %v352
    %v354 = vld [vmem:[#allocation11] sm:$0xf]
    %v355 = vld [vmem:[#allocation11 + $0x4] sm:$0xf]
    %v356 = vld [vmem:[#allocation11 + $0x8] sm:$0xf]
    %v357 = vld [vmem:[#allocation11 + $0xc] sm:$0xf]
    %358 = vrot.lane.b32.xlu0 %v342, 32
    %v359 = vpop.permute.xlu0 %358
    %v364 = vunpack.c.l.b16 %v354
    %v365 = vunpack.c.l.b16 %v355
    %v366 = vunpack.c.l.b16 %v356
    %v367 = vunpack.c.l.b16 %v357
    %v368 = vpack.c.b16 %v365, %v364
    %v369 = vpack.c.b16 %v367, %v366
    %v373 = vsel %vm269, %v359, 0
    %375 = vmatprep.subr.bf16.mxu0 0
    %376 = vmatpush1.bf16.msra.mxu0 %v368
    %377 = vmatprep.subr.bf16.mxu0 0
    %378 = vmatpush1.bf16.msra.mxu0 %v369
    %379 = vmatprep.subr.bf16.mxu0 0
    %380 = vmatpush1.bf16.msra.mxu0 0
    %381 = vmatprep.subr.bf16.mxu0 0
    %382 = vmatpush1.bf16.msra.mxu0 0
    %383 = vmatprep.subr.bf16.mxu0 0
    %384 = vmatpush1.bf16.msra.mxu0 0
    %385 = vmatprep.subr.bf16.mxu0 0
    %386 = vmatpush1.bf16.msra.mxu0 0
    %387 = vmatprep.subr.bf16.mxu0 0
    %388 = vmatpush1.bf16.msra.mxu0 0
    %389 = vmatprep.subr.bf16.mxu0 0
    %390 = vmatpush1.bf16.msra.mxu0 0
    %391 = vmatprep.subr.bf16.mxu0 0
    %392 = vmatpush1.bf16.msra.mxu0 0
    %393 = vmatprep.subr.bf16.mxu0 0
    %394 = vmatpush1.bf16.msra.mxu0 0
    %395 = vmatprep.subr.bf16.mxu0 0
    %396 = vmatpush1.bf16.msra.mxu0 0
    %397 = vmatprep.subr.bf16.mxu0 0
    %398 = vmatpush1.bf16.msra.mxu0 0
    %399 = vmatprep.subr.bf16.mxu0 0
    %400 = vmatpush1.bf16.msra.mxu0 0
    %401 = vmatprep.subr.bf16.mxu0 0
    %402 = vmatpush1.bf16.msra.mxu0 0
    %403 = vmatprep.subr.bf16.mxu0 0
    %404 = vmatpush1.bf16.msra.mxu0 0
    %405 = vmatprep.subr.bf16.mxu0 0
    %406 = vmatpush1.bf16.msra.mxu0 0
    %407 = vmatprep.mubr.bf16.mxu0 0
    %408 = vmatmul.mubr.bf16.gmra.mrb[0].mxu0 %v373
    %v409 = vpop.f32.mrb[0].mxu0
    %v410 = vadd.f32 0.0, %v409
    %v411 = vpop.f32.mrb[0].mxu0
    %v412 = vpop.f32.mrb[0].mxu0
    %v413 = vpop.f32.mrb[0].mxu0
    %414 = vdwg.mxu0
    %v415 = vadd.f32 %v353, %v410
    %v416 = vxor.u32 %v415, 2147483648
    %v417 = vmul.f32 %v416, 1.442695
    %v418 = vpow.pop %v417
    %v419 = vadd.f32 %v418, 1.0
    %v420 = vrcp.pop %v419
    %v421 = vmul.f32 1.0, %v420
    %v422 = vtanh.pop %v415
    %v423 = vmul.f32 %v421, %v335
    %425 = vrot.lane.b32.xlu0 %v422, 64
    %v426 = vpop.permute.xlu0 %425
    %v428 = vmul.f32 %v421, %v426
    %430 = vrot.lane.b32.xlu0 %v428, 32
    %v431 = vpop.permute.xlu0 %430
    %v433 = vadd.f32 %v423, %v431
    %v434 = vtanh.pop %v433
    %436 = vrot.lane.b32.xlu0 %v434, 64
    %v437 = vpop.permute.xlu0 %436
    %v439 = vmul.f32 %v421, %v437
    %v440 = vpack.c.bf16 %v439, %v439
    %v442 = vunpack.c.l.b16 %v440
    %v443 = vpack.c.b16 %v442, %v442
    %444 = vrot.lane.b32.xlu0 %v443, 32
    %v445 = vpop.permute.xlu0 %444
    %s447 = scalar_lea.vmem [#allocation3], 4
    %448 = vst.msk [vmem:[%s447] sm:$0xf] %vm349, %v445
    %s449 = scalar_lea.vmem [#allocation2], 8
    %v450 = vld [vmem:[%s449] sm:$0xf]
    %v451 = vunpack.c.l.bf16 %v450
    %v452 = vld [vmem:[#allocation11] sm:$0xf]
    %v453 = vld [vmem:[#allocation11 + $0x4] sm:$0xf]
    %v454 = vld [vmem:[#allocation11 + $0x8] sm:$0xf]
    %v455 = vld [vmem:[#allocation11 + $0xc] sm:$0xf]
    %456 = vrot.lane.b32.xlu0 %v440, 32
    %v457 = vpop.permute.xlu0 %456
    %v462 = vunpack.c.l.b16 %v452
    %v463 = vunpack.c.l.b16 %v453
    %v464 = vunpack.c.l.b16 %v454
    %v465 = vunpack.c.l.b16 %v455
    %v466 = vpack.c.b16 %v463, %v462
    %v467 = vpack.c.b16 %v465, %v464
    %v471 = vsel %vm269, %v457, 0
    %473 = vmatprep.subr.bf16.mxu0 0
    %474 = vmatpush1.bf16.msra.mxu0 %v466
    %475 = vmatprep.subr.bf16.mxu0 0
    %476 = vmatpush1.bf16.msra.mxu0 %v467
    %477 = vmatprep.subr.bf16.mxu0 0
    %478 = vmatpush1.bf16.msra.mxu0 0
    %479 = vmatprep.subr.bf16.mxu0 0
    %480 = vmatpush1.bf16.msra.mxu0 0
    %481 = vmatprep.subr.bf16.mxu0 0
    %482 = vmatpush1.bf16.msra.mxu0 0
    %483 = vmatprep.subr.bf16.mxu0 0
    %484 = vmatpush1.bf16.msra.mxu0 0
    %485 = vmatprep.subr.bf16.mxu0 0
    %486 = vmatpush1.bf16.msra.mxu0 0
    %487 = vmatprep.subr.bf16.mxu0 0
    %488 = vmatpush1.bf16.msra.mxu0 0
    %489 = vmatprep.subr.bf16.mxu0 0
    %490 = vmatpush1.bf16.msra.mxu0 0
    %491 = vmatprep.subr.bf16.mxu0 0
    %492 = vmatpush1.bf16.msra.mxu0 0
    %493 = vmatprep.subr.bf16.mxu0 0
    %494 = vmatpush1.bf16.msra.mxu0 0
    %495 = vmatprep.subr.bf16.mxu0 0
    %496 = vmatpush1.bf16.msra.mxu0 0
    %497 = vmatprep.subr.bf16.mxu0 0
    %498 = vmatpush1.bf16.msra.mxu0 0
    %499 = vmatprep.subr.bf16.mxu0 0
    %500 = vmatpush1.bf16.msra.mxu0 0
    %501 = vmatprep.subr.bf16.mxu0 0
    %502 = vmatpush1.bf16.msra.mxu0 0
    %503 = vmatprep.subr.bf16.mxu0 0
    %504 = vmatpush1.bf16.msra.mxu0 0
    %505 = vmatprep.mubr.bf16.mxu0 0
    %506 = vmatmul.mubr.bf16.gmra.mrb[0].mxu0 %v471
    %v507 = vpop.f32.mrb[0].mxu0
    %v508 = vadd.f32 0.0, %v507
    %v509 = vpop.f32.mrb[0].mxu0
    %v510 = vpop.f32.mrb[0].mxu0
    %v511 = vpop.f32.mrb[0].mxu0
    %512 = vdwg.mxu0
    %v513 = vadd.f32 %v451, %v508
    %v514 = vxor.u32 %v513, 2147483648
    %v515 = vmul.f32 %v514, 1.442695
    %v516 = vpow.pop %v515
    %v517 = vadd.f32 %v516, 1.0
    %v518 = vrcp.pop %v517
    %v519 = vmul.f32 1.0, %v518
    %v520 = vtanh.pop %v513
    %v521 = vmul.f32 %v519, %v433
    %523 = vrot.lane.b32.xlu0 %v520, 64
    %v524 = vpop.permute.xlu0 %523
    %v526 = vmul.f32 %v519, %v524
    %528 = vrot.lane.b32.xlu0 %v526, 32
    %v529 = vpop.permute.xlu0 %528
    %v531 = vadd.f32 %v521, %v529
    %v532 = vtanh.pop %v531
    %534 = vrot.lane.b32.xlu0 %v532, 64
    %v535 = vpop.permute.xlu0 %534
    %v537 = vmul.f32 %v519, %v535
    %v538 = vpack.c.bf16 %v537, %v537
    %v540 = vunpack.c.l.b16 %v538
    %v541 = vpack.c.b16 %v540, %v540
    %542 = vrot.lane.b32.xlu0 %v541, 32
    %v543 = vpop.permute.xlu0 %542
    %s545 = scalar_lea.vmem [#allocation3], 8
    %546 = vst.msk [vmem:[%s545] sm:$0xf] %vm349, %v543
    %s547 = scalar_lea.vmem [#allocation2], 12
    %v548 = vld [vmem:[%s547] sm:$0xf]
    %v549 = vunpack.c.l.bf16 %v548
    %v550 = vld [vmem:[#allocation11] sm:$0xf]
    %v551 = vld [vmem:[#allocation11 + $0x4] sm:$0xf]
    %v552 = vld [vmem:[#allocation11 + $0x8] sm:$0xf]
    %v553 = vld [vmem:[#allocation11 + $0xc] sm:$0xf]
    %554 = vrot.lane.b32.xlu0 %v538, 32
    %v555 = vpop.permute.xlu0 %554
    %v560 = vunpack.c.l.b16 %v550
    %v561 = vunpack.c.l.b16 %v551
    %v562 = vunpack.c.l.b16 %v552
    %v563 = vunpack.c.l.b16 %v553
    %v564 = vpack.c.b16 %v561, %v560
    %v565 = vpack.c.b16 %v563, %v562
    %v569 = vsel %vm269, %v555, 0
    %571 = vmatprep.subr.bf16.mxu0 0
    %572 = vmatpush1.bf16.msra.mxu0 %v564
    %573 = vmatprep.subr.bf16.mxu0 0
    %574 = vmatpush1.bf16.msra.mxu0 %v565
    %575 = vmatprep.subr.bf16.mxu0 0
    %576 = vmatpush1.bf16.msra.mxu0 0
    %577 = vmatprep.subr.bf16.mxu0 0
    %578 = vmatpush1.bf16.msra.mxu0 0
    %579 = vmatprep.subr.bf16.mxu0 0
    %580 = vmatpush1.bf16.msra.mxu0 0
    %581 = vmatprep.subr.bf16.mxu0 0
    %582 = vmatpush1.bf16.msra.mxu0 0
    %583 = vmatprep.subr.bf16.mxu0 0
    %584 = vmatpush1.bf16.msra.mxu0 0
    %585 = vmatprep.subr.bf16.mxu0 0
    %586 = vmatpush1.bf16.msra.mxu0 0
    %587 = vmatprep.subr.bf16.mxu0 0
    %588 = vmatpush1.bf16.msra.mxu0 0
    %589 = vmatprep.subr.bf16.mxu0 0
    %590 = vmatpush1.bf16.msra.mxu0 0
    %591 = vmatprep.subr.bf16.mxu0 0
    %592 = vmatpush1.bf16.msra.mxu0 0
    %593 = vmatprep.subr.bf16.mxu0 0
    %594 = vmatpush1.bf16.msra.mxu0 0
    %595 = vmatprep.subr.bf16.mxu0 0
    %596 = vmatpush1.bf16.msra.mxu0 0
    %597 = vmatprep.subr.bf16.mxu0 0
    %598 = vmatpush1.bf16.msra.mxu0 0
    %599 = vmatprep.subr.bf16.mxu0 0
    %600 = vmatpush1.bf16.msra.mxu0 0
    %601 = vmatprep.subr.bf16.mxu0 0
    %602 = vmatpush1.bf16.msra.mxu0 0
    %603 = vmatprep.mubr.bf16.mxu0 0
    %604 = vmatmul.mubr.bf16.gmra.mrb[0].mxu0 %v569
    %v605 = vpop.f32.mrb[0].mxu0
    %v606 = vadd.f32 0.0, %v605
    %v607 = vpop.f32.mrb[0].mxu0
    %v608 = vpop.f32.mrb[0].mxu0
    %v609 = vpop.f32.mrb[0].mxu0
    %610 = vdwg.mxu0
    %v611 = vadd.f32 %v549, %v606
    %v612 = vxor.u32 %v611, 2147483648
    %v613 = vmul.f32 %v612, 1.442695
    %v614 = vpow.pop %v613
    %v615 = vadd.f32 %v614, 1.0
    %v616 = vrcp.pop %v615
    %v617 = vmul.f32 1.0, %v616
    %v618 = vtanh.pop %v611
    %v619 = vmul.f32 %v617, %v531
    %621 = vrot.lane.b32.xlu0 %v618, 64
    %v622 = vpop.permute.xlu0 %621
    %v624 = vmul.f32 %v617, %v622
    %626 = vrot.lane.b32.xlu0 %v624, 32
    %v627 = vpop.permute.xlu0 %626
    %v629 = vadd.f32 %v619, %v627
    %v630 = vtanh.pop %v629
    %632 = vrot.lane.b32.xlu0 %v630, 64
    %v633 = vpop.permute.xlu0 %632
    %v635 = vmul.f32 %v617, %v633
    %v636 = vpack.c.bf16 %v635, %v635
    %v638 = vunpack.c.l.b16 %v636
    %v639 = vpack.c.b16 %v638, %v638
    %640 = vrot.lane.b32.xlu0 %v639, 32
    %v641 = vpop.permute.xlu0 %640
    %s643 = scalar_lea.vmem [#allocation3], 12
    %644 = vst.msk [vmem:[%s643] sm:$0xf] %vm349, %v641
    %s645 = scalar_lea.vmem [#allocation2], 16
    %v646 = vld [vmem:[%s645] sm:$0xf]
    %v647 = vunpack.c.l.bf16 %v646
    %v648 = vld [vmem:[#allocation11] sm:$0xf]
    %v649 = vld [vmem:[#allocation11 + $0x4] sm:$0xf]
    %v650 = vld [vmem:[#allocation11 + $0x8] sm:$0xf]
    %v651 = vld [vmem:[#allocation11 + $0xc] sm:$0xf]
    %652 = vrot.lane.b32.xlu0 %v636, 32
    %v653 = vpop.permute.xlu0 %652
    %v658 = vunpack.c.l.b16 %v648
    %v659 = vunpack.c.l.b16 %v649
    %v660 = vunpack.c.l.b16 %v650
    %v661 = vunpack.c.l.b16 %v651
    %v662 = vpack.c.b16 %v659, %v658
    %v663 = vpack.c.b16 %v661, %v660
    %v667 = vsel %vm269, %v653, 0
    %669 = vmatprep.subr.bf16.mxu0 0
    %670 = vmatpush1.bf16.msra.mxu0 %v662
    %671 = vmatprep.subr.bf16.mxu0 0
    %672 = vmatpush1.bf16.msra.mxu0 %v663
    %673 = vmatprep.subr.bf16.mxu0 0
    %674 = vmatpush1.bf16.msra.mxu0 0
    %675 = vmatprep.subr.bf16.mxu0 0
    %676 = vmatpush1.bf16.msra.mxu0 0
    %677 = vmatprep.subr.bf16.mxu0 0
    %678 = vmatpush1.bf16.msra.mxu0 0
    %679 = vmatprep.subr.bf16.mxu0 0
    %680 = vmatpush1.bf16.msra.mxu0 0
    %681 = vmatprep.subr.bf16.mxu0 0
    %682 = vmatpush1.bf16.msra.mxu0 0
    %683 = vmatprep.subr.bf16.mxu0 0
    %684 = vmatpush1.bf16.msra.mxu0 0
    %685 = vmatprep.subr.bf16.mxu0 0
    %686 = vmatpush1.bf16.msra.mxu0 0
    %687 = vmatprep.subr.bf16.mxu0 0
    %688 = vmatpush1.bf16.msra.mxu0 0
    %689 = vmatprep.subr.bf16.mxu0 0
    %690 = vmatpush1.bf16.msra.mxu0 0
    %691 = vmatprep.subr.bf16.mxu0 0
    %692 = vmatpush1.bf16.msra.mxu0 0
    %693 = vmatprep.subr.bf16.mxu0 0
    %694 = vmatpush1.bf16.msra.mxu0 0
    %695 = vmatprep.subr.bf16.mxu0 0
    %696 = vmatpush1.bf16.msra.mxu0 0
    %697 = vmatprep.subr.bf16.mxu0 0
    %698 = vmatpush1.bf16.msra.mxu0 0
    %699 = vmatprep.subr.bf16.mxu0 0
    %700 = vmatpush1.bf16.msra.mxu0 0
    %701 = vmatprep.mubr.bf16.mxu0 0
    %702 = vmatmul.mubr.bf16.gmra.mrb[0].mxu0 %v667
    %v703 = vpop.f32.mrb[0].mxu0
    %v704 = vadd.f32 0.0, %v703
    %v705 = vpop.f32.mrb[0].mxu0
    %v706 = vpop.f32.mrb[0].mxu0
    %v707 = vpop.f32.mrb[0].mxu0
    %708 = vdwg.mxu0
    %v709 = vadd.f32 %v647, %v704
    %v710 = vxor.u32 %v709, 2147483648
    %v711 = vmul.f32 %v710, 1.442695
    %v712 = vpow.pop %v711
    %v713 = vadd.f32 %v712, 1.0
    %v714 = vrcp.pop %v713
    %v715 = vmul.f32 1.0, %v714
    %v716 = vtanh.pop %v709
    %v717 = vmul.f32 %v715, %v629
    %719 = vrot.lane.b32.xlu0 %v716, 64
    %v720 = vpop.permute.xlu0 %719
    %v722 = vmul.f32 %v715, %v720
    %724 = vrot.lane.b32.xlu0 %v722, 32
    %v725 = vpop.permute.xlu0 %724
    %v727 = vadd.f32 %v717, %v725
    %v728 = vtanh.pop %v727
    %730 = vrot.lane.b32.xlu0 %v728, 64
    %v731 = vpop.permute.xlu0 %730
    %v733 = vmul.f32 %v715, %v731
    %v734 = vpack.c.bf16 %v733, %v733
    %v736 = vunpack.c.l.b16 %v734
    %v737 = vpack.c.b16 %v736, %v736
    %738 = vrot.lane.b32.xlu0 %v737, 32
    %v739 = vpop.permute.xlu0 %738
    %s741 = scalar_lea.vmem [#allocation3], 16
    %742 = vst.msk [vmem:[%s741] sm:$0xf] %vm349, %v739
    %s743 = scalar_lea.vmem [#allocation2], 20
    %v744 = vld [vmem:[%s743] sm:$0xf]
    %v745 = vunpack.c.l.bf16 %v744
    %v746 = vld [vmem:[#allocation11] sm:$0xf]
    %v747 = vld [vmem:[#allocation11 + $0x4] sm:$0xf]
    %v748 = vld [vmem:[#allocation11 + $0x8] sm:$0xf]
    %v749 = vld [vmem:[#allocation11 + $0xc] sm:$0xf]
    %750 = vrot.lane.b32.xlu0 %v734, 32
    %v751 = vpop.permute.xlu0 %750
    %v756 = vunpack.c.l.b16 %v746
    %v757 = vunpack.c.l.b16 %v747
    %v758 = vunpack.c.l.b16 %v748
    %v759 = vunpack.c.l.b16 %v749
    %v760 = vpack.c.b16 %v757, %v756
    %v761 = vpack.c.b16 %v759, %v758
    %v765 = vsel %vm269, %v751, 0
    %767 = vmatprep.subr.bf16.mxu0 0
    %768 = vmatpush1.bf16.msra.mxu0 %v760
    %769 = vmatprep.subr.bf16.mxu0 0
    %770 = vmatpush1.bf16.msra.mxu0 %v761
    %771 = vmatprep.subr.bf16.mxu0 0
    %772 = vmatpush1.bf16.msra.mxu0 0
    %773 = vmatprep.subr.bf16.mxu0 0
    %774 = vmatpush1.bf16.msra.mxu0 0
    %775 = vmatprep.subr.bf16.mxu0 0
    %776 = vmatpush1.bf16.msra.mxu0 0
    %777 = vmatprep.subr.bf16.mxu0 0
    %778 = vmatpush1.bf16.msra.mxu0 0
    %779 = vmatprep.subr.bf16.mxu0 0
    %780 = vmatpush1.bf16.msra.mxu0 0
    %781 = vmatprep.subr.bf16.mxu0 0
    %782 = vmatpush1.bf16.msra.mxu0 0
    %783 = vmatprep.subr.bf16.mxu0 0
    %784 = vmatpush1.bf16.msra.mxu0 0
    %785 = vmatprep.subr.bf16.mxu0 0
    %786 = vmatpush1.bf16.msra.mxu0 0
    %787 = vmatprep.subr.bf16.mxu0 0
    %788 = vmatpush1.bf16.msra.mxu0 0
    %789 = vmatprep.subr.bf16.mxu0 0
    %790 = vmatpush1.bf16.msra.mxu0 0
    %791 = vmatprep.subr.bf16.mxu0 0
    %792 = vmatpush1.bf16.msra.mxu0 0
    %793 = vmatprep.subr.bf16.mxu0 0
    %794 = vmatpush1.bf16.msra.mxu0 0
    %795 = vmatprep.subr.bf16.mxu0 0
    %796 = vmatpush1.bf16.msra.mxu0 0
    %797 = vmatprep.subr.bf16.mxu0 0
    %798 = vmatpush1.bf16.msra.mxu0 0
    %799 = vmatprep.mubr.bf16.mxu0 0
    %800 = vmatmul.mubr.bf16.gmra.mrb[0].mxu0 %v765
    %v801 = vpop.f32.mrb[0].mxu0
    %v802 = vadd.f32 0.0, %v801
    %v803 = vpop.f32.mrb[0].mxu0
    %v804 = vpop.f32.mrb[0].mxu0
    %v805 = vpop.f32.mrb[0].mxu0
    %806 = vdwg.mxu0
    %v807 = vadd.f32 %v745, %v802
    %v808 = vxor.u32 %v807, 2147483648
    %v809 = vmul.f32 %v808, 1.442695
    %v810 = vpow.pop %v809
    %v811 = vadd.f32 %v810, 1.0
    %v812 = vrcp.pop %v811
    %v813 = vmul.f32 1.0, %v812
    %v814 = vtanh.pop %v807
    %v815 = vmul.f32 %v813, %v727
    %817 = vrot.lane.b32.xlu0 %v814, 64
    %v818 = vpop.permute.xlu0 %817
    %v820 = vmul.f32 %v813, %v818
    %822 = vrot.lane.b32.xlu0 %v820, 32
    %v823 = vpop.permute.xlu0 %822
    %v825 = vadd.f32 %v815, %v823
    %v826 = vtanh.pop %v825
    %828 = vrot.lane.b32.xlu0 %v826, 64
    %v829 = vpop.permute.xlu0 %828
    %v831 = vmul.f32 %v813, %v829
    %v832 = vpack.c.bf16 %v831, %v831
    %v834 = vunpack.c.l.b16 %v832
    %v835 = vpack.c.b16 %v834, %v834
    %836 = vrot.lane.b32.xlu0 %v835, 32
    %v837 = vpop.permute.xlu0 %836
    %s839 = scalar_lea.vmem [#allocation3], 20
    %840 = vst.msk [vmem:[%s839] sm:$0xf] %vm349, %v837
    %s841 = scalar_lea.vmem [#allocation2], 24
    %v842 = vld [vmem:[%s841] sm:$0xf]
    %v843 = vunpack.c.l.bf16 %v842
    %v844 = vld [vmem:[#allocation11] sm:$0xf]
    %v845 = vld [vmem:[#allocation11 + $0x4] sm:$0xf]
    %v846 = vld [vmem:[#allocation11 + $0x8] sm:$0xf]
    %v847 = vld [vmem:[#allocation11 + $0xc] sm:$0xf]
    %848 = vrot.lane.b32.xlu0 %v832, 32
    %v849 = vpop.permute.xlu0 %848
    %v854 = vunpack.c.l.b16 %v844
    %v855 = vunpack.c.l.b16 %v845
    %v856 = vunpack.c.l.b16 %v846
    %v857 = vunpack.c.l.b16 %v847
    %v858 = vpack.c.b16 %v855, %v854
    %v859 = vpack.c.b16 %v857, %v856
    %v863 = vsel %vm269, %v849, 0
    %865 = vmatprep.subr.bf16.mxu0 0
    %866 = vmatpush1.bf16.msra.mxu0 %v858
    %867 = vmatprep.subr.bf16.mxu0 0
    %868 = vmatpush1.bf16.msra.mxu0 %v859
    %869 = vmatprep.subr.bf16.mxu0 0
    %870 = vmatpush1.bf16.msra.mxu0 0
    %871 = vmatprep.subr.bf16.mxu0 0
    %872 = vmatpush1.bf16.msra.mxu0 0
    %873 = vmatprep.subr.bf16.mxu0 0
    %874 = vmatpush1.bf16.msra.mxu0 0
    %875 = vmatprep.subr.bf16.mxu0 0
    %876 = vmatpush1.bf16.msra.mxu0 0
    %877 = vmatprep.subr.bf16.mxu0 0
    %878 = vmatpush1.bf16.msra.mxu0 0
    %879 = vmatprep.subr.bf16.mxu0 0
    %880 = vmatpush1.bf16.msra.mxu0 0
    %881 = vmatprep.subr.bf16.mxu0 0
    %882 = vmatpush1.bf16.msra.mxu0 0
    %883 = vmatprep.subr.bf16.mxu0 0
    %884 = vmatpush1.bf16.msra.mxu0 0
    %885 = vmatprep.subr.bf16.mxu0 0
    %886 = vmatpush1.bf16.msra.mxu0 0
    %887 = vmatprep.subr.bf16.mxu0 0
    %888 = vmatpush1.bf16.msra.mxu0 0
    %889 = vmatprep.subr.bf16.mxu0 0
    %890 = vmatpush1.bf16.msra.mxu0 0
    %891 = vmatprep.subr.bf16.mxu0 0
    %892 = vmatpush1.bf16.msra.mxu0 0
    %893 = vmatprep.subr.bf16.mxu0 0
    %894 = vmatpush1.bf16.msra.mxu0 0
    %895 = vmatprep.subr.bf16.mxu0 0
    %896 = vmatpush1.bf16.msra.mxu0 0
    %897 = vmatprep.mubr.bf16.mxu0 0
    %898 = vmatmul.mubr.bf16.gmra.mrb[0].mxu0 %v863
    %v899 = vpop.f32.mrb[0].mxu0
    %v900 = vadd.f32 0.0, %v899
    %v901 = vpop.f32.mrb[0].mxu0
    %v902 = vpop.f32.mrb[0].mxu0
    %v903 = vpop.f32.mrb[0].mxu0
    %904 = vdwg.mxu0
    %v905 = vadd.f32 %v843, %v900
    %v906 = vxor.u32 %v905, 2147483648
    %v907 = vmul.f32 %v906, 1.442695
    %v908 = vpow.pop %v907
    %v909 = vadd.f32 %v908, 1.0
    %v910 = vrcp.pop %v909
    %v911 = vmul.f32 1.0, %v910
    %v912 = vtanh.pop %v905
    %v913 = vmul.f32 %v911, %v825
    %915 = vrot.lane.b32.xlu0 %v912, 64
    %v916 = vpop.permute.xlu0 %915
    %v918 = vmul.f32 %v911, %v916
    %920 = vrot.lane.b32.xlu0 %v918, 32
    %v921 = vpop.permute.xlu0 %920
    %v923 = vadd.f32 %v913, %v921
    %v924 = vtanh.pop %v923
    %926 = vrot.lane.b32.xlu0 %v924, 64
    %v927 = vpop.permute.xlu0 %926
    %v929 = vmul.f32 %v911, %v927
    %v930 = vpack.c.bf16 %v929, %v929
    %v932 = vunpack.c.l.b16 %v930
    %v933 = vpack.c.b16 %v932, %v932
    %934 = vrot.lane.b32.xlu0 %v933, 32
    %v935 = vpop.permute.xlu0 %934
    %s937 = scalar_lea.vmem [#allocation3], 24
    %938 = vst.msk [vmem:[%s937] sm:$0xf] %vm349, %v935
    %s939 = scalar_lea.vmem [#allocation2], 28
    %v940 = vld [vmem:[%s939] sm:$0xf]
    %v941 = vunpack.c.l.bf16 %v940
    %v942 = vld [vmem:[#allocation11] sm:$0xf]
    %v943 = vld [vmem:[#allocation11 + $0x4] sm:$0xf]
    %v944 = vld [vmem:[#allocation11 + $0x8] sm:$0xf]
    %v945 = vld [vmem:[#allocation11 + $0xc] sm:$0xf]
    %946 = vrot.lane.b32.xlu0 %v930, 32
    %v947 = vpop.permute.xlu0 %946
    %v952 = vunpack.c.l.b16 %v942
    %v953 = vunpack.c.l.b16 %v943
    %v954 = vunpack.c.l.b16 %v944
    %v955 = vunpack.c.l.b16 %v945
    %v956 = vpack.c.b16 %v953, %v952
    %v957 = vpack.c.b16 %v955, %v954
    %v961 = vsel %vm269, %v947, 0
    %963 = vmatprep.subr.bf16.mxu0 0
    %964 = vmatpush1.bf16.msra.mxu0 %v956
    %965 = vmatprep.subr.bf16.mxu0 0
    %966 = vmatpush1.bf16.msra.mxu0 %v957
    %967 = vmatprep.subr.bf16.mxu0 0
    %968 = vmatpush1.bf16.msra.mxu0 0
    %969 = vmatprep.subr.bf16.mxu0 0
    %970 = vmatpush1.bf16.msra.mxu0 0
    %971 = vmatprep.subr.bf16.mxu0 0
    %972 = vmatpush1.bf16.msra.mxu0 0
    %973 = vmatprep.subr.bf16.mxu0 0
    %974 = vmatpush1.bf16.msra.mxu0 0
    %975 = vmatprep.subr.bf16.mxu0 0
    %976 = vmatpush1.bf16.msra.mxu0 0
    %977 = vmatprep.subr.bf16.mxu0 0
    %978 = vmatpush1.bf16.msra.mxu0 0
    %979 = vmatprep.subr.bf16.mxu0 0
    %980 = vmatpush1.bf16.msra.mxu0 0
    %981 = vmatprep.subr.bf16.mxu0 0
    %982 = vmatpush1.bf16.msra.mxu0 0
    %983 = vmatprep.subr.bf16.mxu0 0
    %984 = vmatpush1.bf16.msra.mxu0 0
    %985 = vmatprep.subr.bf16.mxu0 0
    %986 = vmatpush1.bf16.msra.mxu0 0
    %987 = vmatprep.subr.bf16.mxu0 0
    %988 = vmatpush1.bf16.msra.mxu0 0
    %989 = vmatprep.subr.bf16.mxu0 0
    %990 = vmatpush1.bf16.msra.mxu0 0
    %991 = vmatprep.subr.bf16.mxu0 0
    %992 = vmatpush1.bf16.msra.mxu0 0
    %993 = vmatprep.subr.bf16.mxu0 0
    %994 = vmatpush1.bf16.msra.mxu0 0
    %995 = vmatprep.mubr.bf16.mxu0 0
    %996 = vmatmul.mubr.bf16.gmra.mrb[0].mxu0 %v961
    %v997 = vpop.f32.mrb[0].mxu0
    %v998 = vadd.f32 0.0, %v997
    %v999 = vpop.f32.mrb[0].mxu0
    %v1000 = vpop.f32.mrb[0].mxu0
    %v1001 = vpop.f32.mrb[0].mxu0
    %1002 = vdwg.mxu0
    %v1003 = vadd.f32 %v941, %v998
    %v1004 = vxor.u32 %v1003, 2147483648
    %v1005 = vmul.f32 %v1004, 1.442695
    %v1006 = vpow.pop %v1005
    %v1007 = vadd.f32 %v1006, 1.0
    %v1008 = vrcp.pop %v1007
    %v1009 = vmul.f32 1.0, %v1008
    %v1010 = vtanh.pop %v1003
    %v1011 = vmul.f32 %v1009, %v923
    %1013 = vrot.lane.b32.xlu0 %v1010, 64
    %v1014 = vpop.permute.xlu0 %1013
    %v1016 = vmul.f32 %v1009, %v1014
    %1018 = vrot.lane.b32.xlu0 %v1016, 32
    %v1019 = vpop.permute.xlu0 %1018
    %v1021 = vadd.f32 %v1011, %v1019
    %v1022 = vtanh.pop %v1021
    %1024 = vrot.lane.b32.xlu0 %v1022, 64
    %v1025 = vpop.permute.xlu0 %1024
    %v1027 = vmul.f32 %v1009, %v1025
    %v1028 = vpack.c.bf16 %v1027, %v1027
    %v1030 = vunpack.c.l.b16 %v1028
    %v1031 = vpack.c.b16 %v1030, %v1030
    %1032 = vrot.lane.b32.xlu0 %v1031, 32
    %v1033 = vpop.permute.xlu0 %1032
    %s1035 = scalar_lea.vmem [#allocation3], 28
    %1036 = vst.msk [vmem:[%s1035] sm:$0xf] %vm349, %v1033
    %1038 = vrot.lane.b32.xlu0 %v1027, 32
    %v1039 = vpop.permute.xlu0 %1038
    %1041 = vst.msk [vmem:[#allocation4] sm:$0xff] %vm269, %v1039
    %1043 = vrot.lane.b32.xlu0 %v1021, 96
    %v1044 = vpop.permute.xlu0 %1043
    %1046 = vst.msk [vmem:[#allocation5] sm:$0xff] %vm269, %v1044
    %v1047 = vld [vmem:[#allocation3] sm:$0xf]
    %v1048 = vld [vmem:[#allocation3 + $0x4] sm:$0xf]
    %v1049 = vld [vmem:[#allocation3 + $0x8] sm:$0xf]
    %v1050 = vld [vmem:[#allocation3 + $0xc] sm:$0xf]
    %v1051 = vld [vmem:[#allocation3 + $0x10] sm:$0xf]
    %v1052 = vld [vmem:[#allocation3 + $0x14] sm:$0xf]
    %v1053 = vld [vmem:[#allocation3 + $0x18] sm:$0xf]
    %v1054 = vld [vmem:[#allocation3 + $0x1c] sm:$0xf]
    %v1055 = vld [vmem:[#allocation12] sm:$0xf]
    %v1056 = vld [vmem:[#allocation12 + $0x4] sm:$0xf]
    %v1057 = vld [vmem:[#allocation12 + $0x8] sm:$0xf]
    %v1058 = vld [vmem:[#allocation12 + $0xc] sm:$0xf]
    %v1059 = vld [vmem:[%s6] sm:$0x1]
    %v1061 = vlaneseq
    %v1062 = vshrl.u32 %v1061, 7
    %v1063 = vsub.s32 0, %v1062
    %v1064 = vrot.slane %v1059, %v1063
    %v1074 = vunpack.c.l.b16 %v1047
    %v1075 = vunpack.c.l.b16 %v1048
    %v1076 = vunpack.c.l.b16 %v1049
    %v1077 = vunpack.c.l.b16 %v1050
    %v1078 = vunpack.c.l.b16 %v1051
    %v1079 = vunpack.c.l.b16 %v1052
    %v1080 = vunpack.c.l.b16 %v1053
    %v1081 = vunpack.c.l.b16 %v1054
    %v1082 = vpack.c.b16 %v1075, %v1074
    %v1083 = vpack.c.b16 %v1077, %v1076
    %v1084 = vpack.c.b16 %v1079, %v1078
    %v1085 = vpack.c.b16 %v1081, %v1080
    %v1090 = vunpack.c.l.b16 %v1055
    %v1091 = vunpack.c.l.b16 %v1056
    %v1092 = vunpack.c.l.b16 %v1057
    %v1093 = vunpack.c.l.b16 %v1058
    %v1094 = vpack.c.b16 %v1091, %v1090
    %v1095 = vpack.c.b16 %v1093, %v1092
    %v1099 = vsel %vm269, %v1082, 0
    %v1102 = vsel %vm269, %v1083, 0
    %v1105 = vsel %vm269, %v1084, 0
    %v1108 = vsel %vm269, %v1085, 0
    %1110 = vmatprep.subr.bf16.mxu0 0
    %1111 = vmatpush1.bf16.msra.mxu0 %v1094
    %1112 = vmatprep.subr.bf16.mxu0 0
    %1113 = vmatpush1.bf16.msra.mxu0 %v1095
    %1114 = vmatprep.subr.bf16.mxu0 0
    %1115 = vmatpush1.bf16.msra.mxu0 0
    %1116 = vmatprep.subr.bf16.mxu0 0
    %1117 = vmatpush1.bf16.msra.mxu0 0
    %1118 = vmatprep.subr.bf16.mxu0 0
    %1119 = vmatpush1.bf16.msra.mxu0 0
    %1120 = vmatprep.subr.bf16.mxu0 0
    %1121 = vmatpush1.bf16.msra.mxu0 0
    %1122 = vmatprep.subr.bf16.mxu0 0
    %1123 = vmatpush1.bf16.msra.mxu0 0
    %1124 = vmatprep.subr.bf16.mxu0 0
    %1125 = vmatpush1.bf16.msra.mxu0 0
    %1126 = vmatprep.subr.bf16.mxu0 0
    %1127 = vmatpush1.bf16.msra.mxu0 0
    %1128 = vmatprep.subr.bf16.mxu0 0
    %1129 = vmatpush1.bf16.msra.mxu0 0
    %1130 = vmatprep.subr.bf16.mxu0 0
    %1131 = vmatpush1.bf16.msra.mxu0 0
    %1132 = vmatprep.subr.bf16.mxu0 0
    %1133 = vmatpush1.bf16.msra.mxu0 0
    %1134 = vmatprep.subr.bf16.mxu0 0
    %1135 = vmatpush1.bf16.msra.mxu0 0
    %1136 = vmatprep.subr.bf16.mxu0 0
    %1137 = vmatpush1.bf16.msra.mxu0 0
    %1138 = vmatprep.subr.bf16.mxu0 0
    %1139 = vmatpush1.bf16.msra.mxu0 0
    %1140 = vmatprep.subr.bf16.mxu0 0
    %1141 = vmatpush1.bf16.msra.mxu0 0
    %1142 = vmatprep.mubr.bf16.mxu0 0
    %1143 = vmatmul.mubr.bf16.gmra.mrb[0].mxu0 %v1099
    %v1144 = vpop.f32.mrb[0].mxu0
    %v1145 = vadd.f32 %v1064, %v1144
    %v1146 = vpop.f32.mrb[0].mxu0
    %v1147 = vpop.f32.mrb[0].mxu0
    %v1148 = vadd.f32 %v1064, %v1147
    %v1149 = vpop.f32.mrb[0].mxu0
    %1150 = vmatprep.mubr.bf16.mxu0 0
    %1151 = vmatmul.mubr.bf16.gmra.mrb[0].mxu0 %v1102
    %v1152 = vpop.f32.mrb[0].mxu0
    %v1153 = vadd.f32 %v1064, %v1152
    %v1154 = vpop.f32.mrb[0].mxu0
    %v1155 = vpop.f32.mrb[0].mxu0
    %v1156 = vadd.f32 %v1064, %v1155
    %v1157 = vpop.f32.mrb[0].mxu0
    %1158 = vmatprep.mubr.bf16.mxu0 0
    %1159 = vmatmul.mubr.bf16.gmra.mrb[0].mxu0 %v1105
    %v1160 = vpop.f32.mrb[0].mxu0
    %v1161 = vadd.f32 %v1064, %v1160
    %v1162 = vpop.f32.mrb[0].mxu0
    %v1163 = vpop.f32.mrb[0].mxu0
    %v1164 = vadd.f32 %v1064, %v1163
    %v1165 = vpop.f32.mrb[0].mxu0
    %1166 = vmatprep.mubr.bf16.mxu0 0
    %1167 = vmatmul.mubr.bf16.gmra.mrb[0].mxu0 %v1108
    %v1168 = vpop.f32.mrb[0].mxu0
    %v1169 = vadd.f32 %v1064, %v1168
    %v1170 = vpop.f32.mrb[0].mxu0
    %v1171 = vpop.f32.mrb[0].mxu0
    %v1172 = vadd.f32 %v1064, %v1171
    %v1173 = vpop.f32.mrb[0].mxu0
    %1174 = vdwg.mxu0
    %v1175 = vpack.c.bf16 %v1145, %v1145
    %v1176 = vpack.c.bf16 %v1148, %v1148
    %v1177 = vpack.c.bf16 %v1153, %v1153
    %v1178 = vpack.c.bf16 %v1156, %v1156
    %v1179 = vpack.c.bf16 %v1161, %v1161
    %v1180 = vpack.c.bf16 %v1164, %v1164
    %v1181 = vpack.c.bf16 %v1169, %v1169
    %v1182 = vpack.c.bf16 %v1172, %v1172
    %1183 = vst [vmem:[#allocation2] sm:$0xf] %v1175
    %1184 = vst [vmem:[#allocation2 + $0x4] sm:$0xf] %v1176
    %1185 = vst [vmem:[#allocation2 + $0x8] sm:$0xf] %v1177
    %1186 = vst [vmem:[#allocation2 + $0xc] sm:$0xf] %v1178
    %1187 = vst [vmem:[#allocation2 + $0x10] sm:$0xf] %v1179
    %1188 = vst [vmem:[#allocation2 + $0x14] sm:$0xf] %v1180
    %1189 = vst [vmem:[#allocation2 + $0x18] sm:$0xf] %v1181
    %1190 = vst [vmem:[#allocation2 + $0x1c] sm:$0xf] %v1182
    %s1191 = scalar_lea.vmem [#allocation4], 8
    %v1192 = vld [vmem:[%s1191] sm:$0xff]
    %s1193 = scalar_lea.vmem [#allocation5], 8
    %v1194 = vld [vmem:[%s1193] sm:$0xff]
    %v1195 = vld [vmem:[#allocation2] sm:$0xf]
    %v1196 = vunpack.c.l.bf16 %v1195
    %v1197 = vpack.c.bf16 %v1192, %v1192
    %v1198 = vld [vmem:[%s5] sm:$0xf]
    %v1199 = vld [vmem:[%s5 + $0x4] sm:$0xf]
    %v1200 = vld [vmem:[%s5 + $0x8] sm:$0xf]
    %v1201 = vld [vmem:[%s5 + $0xc] sm:$0xf]
    %v1206 = vunpack.c.l.b16 %v1198
    %v1207 = vunpack.c.l.b16 %v1199
    %v1208 = vunpack.c.l.b16 %v1200
    %v1209 = vunpack.c.l.b16 %v1201
    %v1210 = vpack.c.b16 %v1207, %v1206
    %v1211 = vpack.c.b16 %v1209, %v1208
    %v1215 = vsel %vm269, %v1197, 0
    %1217 = vmatprep.subr.bf16.mxu0 0
    %1218 = vmatpush1.bf16.msra.mxu0 %v1210
    %1219 = vmatprep.subr.bf16.mxu0 0
    %1220 = vmatpush1.bf16.msra.mxu0 %v1211
    %1221 = vmatprep.subr.bf16.mxu0 0
    %1222 = vmatpush1.bf16.msra.mxu0 0
    %1223 = vmatprep.subr.bf16.mxu0 0
    %1224 = vmatpush1.bf16.msra.mxu0 0
    %1225 = vmatprep.subr.bf16.mxu0 0
    %1226 = vmatpush1.bf16.msra.mxu0 0
    %1227 = vmatprep.subr.bf16.mxu0 0
    %1228 = vmatpush1.bf16.msra.mxu0 0
    %1229 = vmatprep.subr.bf16.mxu0 0
    %1230 = vmatpush1.bf16.msra.mxu0 0
    %1231 = vmatprep.subr.bf16.mxu0 0
    %1232 = vmatpush1.bf16.msra.mxu0 0
    %1233 = vmatprep.subr.bf16.mxu0 0
    %1234 = vmatpush1.bf16.msra.mxu0 0
    %1235 = vmatprep.subr.bf16.mxu0 0
    %1236 = vmatpush1.bf16.msra.mxu0 0
    %1237 = vmatprep.subr.bf16.mxu0 0
    %1238 = vmatpush1.bf16.msra.mxu0 0
    %1239 = vmatprep.subr.bf16.mxu0 0
    %1240 = vmatpush1.bf16.msra.mxu0 0
    %1241 = vmatprep.subr.bf16.mxu0 0
    %1242 = vmatpush1.bf16.msra.mxu0 0
    %1243 = vmatprep.subr.bf16.mxu0 0
    %1244 = vmatpush1.bf16.msra.mxu0 0
    %1245 = vmatprep.subr.bf16.mxu0 0
    %1246 = vmatpush1.bf16.msra.mxu0 0
    %1247 = vmatprep.subr.bf16.mxu0 0
    %1248 = vmatpush1.bf16.msra.mxu0 0
    %1249 = vmatprep.mubr.bf16.mxu0 0
    %1250 = vmatmul.mubr.bf16.gmra.mrb[0].mxu0 %v1215
    %v1251 = vpop.f32.mrb[0].mxu0
    %v1252 = vadd.f32 0.0, %v1251
    %v1253 = vpop.f32.mrb[0].mxu0
    %v1254 = vpop.f32.mrb[0].mxu0
    %v1255 = vpop.f32.mrb[0].mxu0
    %1256 = vdwg.mxu0
    %v1257 = vadd.f32 %v1196, %v1252
    %v1258 = vxor.u32 %v1257, 2147483648
    %v1259 = vmul.f32 %v1258, 1.442695
    %v1260 = vpow.pop %v1259
    %v1261 = vadd.f32 %v1260, 1.0
    %v1262 = vrcp.pop %v1261
    %v1263 = vmul.f32 1.0, %v1262
    %v1264 = vtanh.pop %v1257
    %1266 = vrot.lane.b32.xlu0 %v1194, 32
    %v1267 = vpop.permute.xlu0 %1266
    %v1269 = vmul.f32 %v1263, %v1267
    %1271 = vrot.lane.b32.xlu0 %v1264, 64
    %v1272 = vpop.permute.xlu0 %1271
    %v1274 = vmul.f32 %v1263, %v1272
    %1276 = vrot.lane.b32.xlu0 %v1274, 32
    %v1277 = vpop.permute.xlu0 %1276
    %v1279 = vadd.f32 %v1269, %v1277
    %v1280 = vtanh.pop %v1279
    %1282 = vrot.lane.b32.xlu0 %v1280, 64
    %v1283 = vpop.permute.xlu0 %1282
    %v1285 = vmul.f32 %v1263, %v1283
    %v1286 = vld [vmem:[%s351] sm:$0xf]
    %v1287 = vunpack.c.l.bf16 %v1286
    %v1288 = vpack.c.bf16 %v1285, %v1285
    %1290 = vrot.lane.b32.xlu0 %v1288, 32
    %v1291 = vpop.permute.xlu0 %1290
    %v1293 = vsel %vm269, %v1291, 0
    %1295 = vmatprep.subr.bf16.mxu0 0
    %1296 = vmatpush1.bf16.msra.mxu0 %v1210
    %1297 = vmatprep.subr.bf16.mxu0 0
    %1298 = vmatpush1.bf16.msra.mxu0 %v1211
    %1299 = vmatprep.subr.bf16.mxu0 0
    %1300 = vmatpush1.bf16.msra.mxu0 0
    %1301 = vmatprep.subr.bf16.mxu0 0
    %1302 = vmatpush1.bf16.msra.mxu0 0
    %1303 = vmatprep.subr.bf16.mxu0 0
    %1304 = vmatpush1.bf16.msra.mxu0 0
    %1305 = vmatprep.subr.bf16.mxu0 0
    %1306 = vmatpush1.bf16.msra.mxu0 0
    %1307 = vmatprep.subr.bf16.mxu0 0
    %1308 = vmatpush1.bf16.msra.mxu0 0
    %1309 = vmatprep.subr.bf16.mxu0 0
    %1310 = vmatpush1.bf16.msra.mxu0 0
    %1311 = vmatprep.subr.bf16.mxu0 0
    %1312 = vmatpush1.bf16.msra.mxu0 0
    %1313 = vmatprep.subr.bf16.mxu0 0
    %1314 = vmatpush1.bf16.msra.mxu0 0
    %1315 = vmatprep.subr.bf16.mxu0 0
    %1316 = vmatpush1.bf16.msra.mxu0 0
    %1317 = vmatprep.subr.bf16.mxu0 0
    %1318 = vmatpush1.bf16.msra.mxu0 0
    %1319 = vmatprep.subr.bf16.mxu0 0
    %1320 = vmatpush1.bf16.msra.mxu0 0
    %1321 = vmatprep.subr.bf16.mxu0 0
    %1322 = vmatpush1.bf16.msra.mxu0 0
    %1323 = vmatprep.subr.bf16.mxu0 0
    %1324 = vmatpush1.bf16.msra.mxu0 0
    %1325 = vmatprep.subr.bf16.mxu0 0
    %1326 = vmatpush1.bf16.msra.mxu0 0
    %1327 = vmatprep.mubr.bf16.mxu0 0
    %1328 = vmatmul.mubr.bf16.gmra.mrb[0].mxu0 %v1293
    %v1329 = vpop.f32.mrb[0].mxu0
    %v1330 = vadd.f32 0.0, %v1329
    %v1331 = vpop.f32.mrb[0].mxu0
    %v1332 = vpop.f32.mrb[0].mxu0
    %v1333 = vpop.f32.mrb[0].mxu0
    %1334 = vdwg.mxu0
    %v1335 = vadd.f32 %v1287, %v1330
    %v1336 = vxor.u32 %v1335, 2147483648
    %v1337 = vmul.f32 %v1336, 1.442695
    %v1338 = vpow.pop %v1337
    %v1339 = vadd.f32 %v1338, 1.0
    %v1340 = vrcp.pop %v1339
    %v1341 = vmul.f32 1.0, %v1340
    %v1342 = vtanh.pop %v1335
    %v1343 = vmul.f32 %v1341, %v1279
    %1345 = vrot.lane.b32.xlu0 %v1342, 64
    %v1346 = vpop.permute.xlu0 %1345
    %v1348 = vmul.f32 %v1341, %v1346
    %1350 = vrot.lane.b32.xlu0 %v1348, 32
    %v1351 = vpop.permute.xlu0 %1350
    %v1353 = vadd.f32 %v1343, %v1351
    %v1354 = vtanh.pop %v1353
    %1356 = vrot.lane.b32.xlu0 %v1354, 64
    %v1357 = vpop.permute.xlu0 %1356
    %v1359 = vmul.f32 %v1341, %v1357
    %v1360 = vld [vmem:[%s449] sm:$0xf]
    %v1361 = vunpack.c.l.bf16 %v1360
    %v1362 = vpack.c.bf16 %v1359, %v1359
    %1364 = vrot.lane.b32.xlu0 %v1362, 32
    %v1365 = vpop.permute.xlu0 %1364
    %v1367 = vsel %vm269, %v1365, 0
    %1369 = vmatprep.subr.bf16.mxu0 0
    %1370 = vmatpush1.bf16.msra.mxu0 %v1210
    %1371 = vmatprep.subr.bf16.mxu0 0
    %1372 = vmatpush1.bf16.msra.mxu0 %v1211
    %1373 = vmatprep.subr.bf16.mxu0 0
    %1374 = vmatpush1.bf16.msra.mxu0 0
    %1375 = vmatprep.subr.bf16.mxu0 0
    %1376 = vmatpush1.bf16.msra.mxu0 0
    %1377 = vmatprep.subr.bf16.mxu0 0
    %1378 = vmatpush1.bf16.msra.mxu0 0
    %1379 = vmatprep.subr.bf16.mxu0 0
    %1380 = vmatpush1.bf16.msra.mxu0 0
    %1381 = vmatprep.subr.bf16.mxu0 0
    %1382 = vmatpush1.bf16.msra.mxu0 0
    %1383 = vmatprep.subr.bf16.mxu0 0
    %1384 = vmatpush1.bf16.msra.mxu0 0
    %1385 = vmatprep.subr.bf16.mxu0 0
    %1386 = vmatpush1.bf16.msra.mxu0 0
    %1387 = vmatprep.subr.bf16.mxu0 0
    %1388 = vmatpush1.bf16.msra.mxu0 0
    %1389 = vmatprep.subr.bf16.mxu0 0
    %1390 = vmatpush1.bf16.msra.mxu0 0
    %1391 = vmatprep.subr.bf16.mxu0 0
    %1392 = vmatpush1.bf16.msra.mxu0 0
    %1393 = vmatprep.subr.bf16.mxu0 0
    %1394 = vmatpush1.bf16.msra.mxu0 0
    %1395 = vmatprep.subr.bf16.mxu0 0
    %1396 = vmatpush1.bf16.msra.mxu0 0
    %1397 = vmatprep.subr.bf16.mxu0 0
    %1398 = vmatpush1.bf16.msra.mxu0 0
    %1399 = vmatprep.subr.bf16.mxu0 0
    %1400 = vmatpush1.bf16.msra.mxu0 0
    %1401 = vmatprep.mubr.bf16.mxu0 0
    %1402 = vmatmul.mubr.bf16.gmra.mrb[0].mxu0 %v1367
    %v1403 = vpop.f32.mrb[0].mxu0
    %v1404 = vadd.f32 0.0, %v1403
    %v1405 = vpop.f32.mrb[0].mxu0
    %v1406 = vpop.f32.mrb[0].mxu0
    %v1407 = vpop.f32.mrb[0].mxu0
    %1408 = vdwg.mxu0
    %v1409 = vadd.f32 %v1361, %v1404
    %v1410 = vxor.u32 %v1409, 2147483648
    %v1411 = vmul.f32 %v1410, 1.442695
    %v1412 = vpow.pop %v1411
    %v1413 = vadd.f32 %v1412, 1.0
    %v1414 = vrcp.pop %v1413
    %v1415 = vmul.f32 1.0, %v1414
    %v1416 = vtanh.pop %v1409
    %v1417 = vmul.f32 %v1415, %v1353
    %1419 = vrot.lane.b32.xlu0 %v1416, 64
    %v1420 = vpop.permute.xlu0 %1419
    %v1422 = vmul.f32 %v1415, %v1420
    %1424 = vrot.lane.b32.xlu0 %v1422, 32
    %v1425 = vpop.permute.xlu0 %1424
    %v1427 = vadd.f32 %v1417, %v1425
    %v1428 = vtanh.pop %v1427
    %1430 = vrot.lane.b32.xlu0 %v1428, 64
    %v1431 = vpop.permute.xlu0 %1430
    %v1433 = vmul.f32 %v1415, %v1431
    %v1434 = vld [vmem:[%s547] sm:$0xf]
    %v1435 = vunpack.c.l.bf16 %v1434
    %v1436 = vpack.c.bf16 %v1433, %v1433
    %1438 = vrot.lane.b32.xlu0 %v1436, 32
    %v1439 = vpop.permute.xlu0 %1438
    %v1441 = vsel %vm269, %v1439, 0
    %1443 = vmatprep.subr.bf16.mxu0 0
    %1444 = vmatpush1.bf16.msra.mxu0 %v1210
    %1445 = vmatprep.subr.bf16.mxu0 0
    %1446 = vmatpush1.bf16.msra.mxu0 %v1211
    %1447 = vmatprep.subr.bf16.mxu0 0
    %1448 = vmatpush1.bf16.msra.mxu0 0
    %1449 = vmatprep.subr.bf16.mxu0 0
    %1450 = vmatpush1.bf16.msra.mxu0 0
    %1451 = vmatprep.subr.bf16.mxu0 0
    %1452 = vmatpush1.bf16.msra.mxu0 0
    %1453 = vmatprep.subr.bf16.mxu0 0
    %1454 = vmatpush1.bf16.msra.mxu0 0
    %1455 = vmatprep.subr.bf16.mxu0 0
    %1456 = vmatpush1.bf16.msra.mxu0 0
    %1457 = vmatprep.subr.bf16.mxu0 0
    %1458 = vmatpush1.bf16.msra.mxu0 0
    %1459 = vmatprep.subr.bf16.mxu0 0
    %1460 = vmatpush1.bf16.msra.mxu0 0
    %1461 = vmatprep.subr.bf16.mxu0 0
    %1462 = vmatpush1.bf16.msra.mxu0 0
    %1463 = vmatprep.subr.bf16.mxu0 0
    %1464 = vmatpush1.bf16.msra.mxu0 0
    %1465 = vmatprep.subr.bf16.mxu0 0
    %1466 = vmatpush1.bf16.msra.mxu0 0
    %1467 = vmatprep.subr.bf16.mxu0 0
    %1468 = vmatpush1.bf16.msra.mxu0 0
    %1469 = vmatprep.subr.bf16.mxu0 0
    %1470 = vmatpush1.bf16.msra.mxu0 0
    %1471 = vmatprep.subr.bf16.mxu0 0
    %1472 = vmatpush1.bf16.msra.mxu0 0
    %1473 = vmatprep.subr.bf16.mxu0 0
    %1474 = vmatpush1.bf16.msra.mxu0 0
    %1475 = vmatprep.mubr.bf16.mxu0 0
    %1476 = vmatmul.mubr.bf16.gmra.mrb[0].mxu0 %v1441
    %v1477 = vpop.f32.mrb[0].mxu0
    %v1478 = vadd.f32 0.0, %v1477
    %v1479 = vpop.f32.mrb[0].mxu0
    %v1480 = vpop.f32.mrb[0].mxu0
    %v1481 = vpop.f32.mrb[0].mxu0
    %1482 = vdwg.mxu0
    %v1483 = vadd.f32 %v1435, %v1478
    %v1484 = vxor.u32 %v1483, 2147483648
    %v1485 = vmul.f32 %v1484, 1.442695
    %v1486 = vpow.pop %v1485
    %v1487 = vadd.f32 %v1486, 1.0
    %v1488 = vrcp.pop %v1487
    %v1489 = vmul.f32 1.0, %v1488
    %v1490 = vtanh.pop %v1483
    %v1491 = vmul.f32 %v1489, %v1427
    %1493 = vrot.lane.b32.xlu0 %v1490, 64
    %v1494 = vpop.permute.xlu0 %1493
    %v1496 = vmul.f32 %v1489, %v1494
    %1498 = vrot.lane.b32.xlu0 %v1496, 32
    %v1499 = vpop.permute.xlu0 %1498
    %v1501 = vadd.f32 %v1491, %v1499
    %v1502 = vtanh.pop %v1501
    %1504 = vrot.lane.b32.xlu0 %v1502, 64
    %v1505 = vpop.permute.xlu0 %1504
    %v1507 = vmul.f32 %v1489, %v1505
    %v1508 = vld [vmem:[%s645] sm:$0xf]
    %v1509 = vunpack.c.l.bf16 %v1508
    %v1510 = vpack.c.bf16 %v1507, %v1507
    %1512 = vrot.lane.b32.xlu0 %v1510, 32
    %v1513 = vpop.permute.xlu0 %1512
    %v1515 = vsel %vm269, %v1513, 0
    %1517 = vmatprep.subr.bf16.mxu0 0
    %1518 = vmatpush1.bf16.msra.mxu0 %v1210
    %1519 = vmatprep.subr.bf16.mxu0 0
    %1520 = vmatpush1.bf16.msra.mxu0 %v1211
    %1521 = vmatprep.subr.bf16.mxu0 0
    %1522 = vmatpush1.bf16.msra.mxu0 0
    %1523 = vmatprep.subr.bf16.mxu0 0
    %1524 = vmatpush1.bf16.msra.mxu0 0
    %1525 = vmatprep.subr.bf16.mxu0 0
    %1526 = vmatpush1.bf16.msra.mxu0 0
    %1527 = vmatprep.subr.bf16.mxu0 0
    %1528 = vmatpush1.bf16.msra.mxu0 0
    %1529 = vmatprep.subr.bf16.mxu0 0
    %1530 = vmatpush1.bf16.msra.mxu0 0
    %1531 = vmatprep.subr.bf16.mxu0 0
    %1532 = vmatpush1.bf16.msra.mxu0 0
    %1533 = vmatprep.subr.bf16.mxu0 0
    %1534 = vmatpush1.bf16.msra.mxu0 0
    %1535 = vmatprep.subr.bf16.mxu0 0
    %1536 = vmatpush1.bf16.msra.mxu0 0
    %1537 = vmatprep.subr.bf16.mxu0 0
    %1538 = vmatpush1.bf16.msra.mxu0 0
    %1539 = vmatprep.subr.bf16.mxu0 0
    %1540 = vmatpush1.bf16.msra.mxu0 0
    %1541 = vmatprep.subr.bf16.mxu0 0
    %1542 = vmatpush1.bf16.msra.mxu0 0
    %1543 = vmatprep.subr.bf16.mxu0 0
    %1544 = vmatpush1.bf16.msra.mxu0 0
    %1545 = vmatprep.subr.bf16.mxu0 0
    %1546 = vmatpush1.bf16.msra.mxu0 0
    %1547 = vmatprep.subr.bf16.mxu0 0
    %1548 = vmatpush1.bf16.msra.mxu0 0
    %1549 = vmatprep.mubr.bf16.mxu0 0
    %1550 = vmatmul.mubr.bf16.gmra.mrb[0].mxu0 %v1515
    %v1551 = vpop.f32.mrb[0].mxu0
    %v1552 = vadd.f32 0.0, %v1551
    %v1553 = vpop.f32.mrb[0].mxu0
    %v1554 = vpop.f32.mrb[0].mxu0
    %v1555 = vpop.f32.mrb[0].mxu0
    %1556 = vdwg.mxu0
    %v1557 = vadd.f32 %v1509, %v1552
    %v1558 = vxor.u32 %v1557, 2147483648
    %v1559 = vmul.f32 %v1558, 1.442695
    %v1560 = vpow.pop %v1559
    %v1561 = vadd.f32 %v1560, 1.0
    %v1562 = vrcp.pop %v1561
    %v1563 = vmul.f32 1.0, %v1562
    %v1564 = vtanh.pop %v1557
    %v1565 = vmul.f32 %v1563, %v1501
    %1567 = vrot.lane.b32.xlu0 %v1564, 64
    %v1568 = vpop.permute.xlu0 %1567
    %v1570 = vmul.f32 %v1563, %v1568
    %1572 = vrot.lane.b32.xlu0 %v1570, 32
    %v1573 = vpop.permute.xlu0 %1572
    %v1575 = vadd.f32 %v1565, %v1573
    %v1576 = vtanh.pop %v1575
    %1578 = vrot.lane.b32.xlu0 %v1576, 64
    %v1579 = vpop.permute.xlu0 %1578
    %v1581 = vmul.f32 %v1563, %v1579
    %v1582 = vld [vmem:[%s743] sm:$0xf]
    %v1583 = vunpack.c.l.bf16 %v1582
    %v1584 = vpack.c.bf16 %v1581, %v1581
    %1586 = vrot.lane.b32.xlu0 %v1584, 32
    %v1587 = vpop.permute.xlu0 %1586
    %v1589 = vsel %vm269, %v1587, 0
    %1591 = vmatprep.subr.bf16.mxu0 0
    %1592 = vmatpush1.bf16.msra.mxu0 %v1210
    %1593 = vmatprep.subr.bf16.mxu0 0
    %1594 = vmatpush1.bf16.msra.mxu0 %v1211
    %1595 = vmatprep.subr.bf16.mxu0 0
    %1596 = vmatpush1.bf16.msra.mxu0 0
    %1597 = vmatprep.subr.bf16.mxu0 0
    %1598 = vmatpush1.bf16.msra.mxu0 0
    %1599 = vmatprep.subr.bf16.mxu0 0
    %1600 = vmatpush1.bf16.msra.mxu0 0
    %1601 = vmatprep.subr.bf16.mxu0 0
    %1602 = vmatpush1.bf16.msra.mxu0 0
    %1603 = vmatprep.subr.bf16.mxu0 0
    %1604 = vmatpush1.bf16.msra.mxu0 0
    %1605 = vmatprep.subr.bf16.mxu0 0
    %1606 = vmatpush1.bf16.msra.mxu0 0
    %1607 = vmatprep.subr.bf16.mxu0 0
    %1608 = vmatpush1.bf16.msra.mxu0 0
    %1609 = vmatprep.subr.bf16.mxu0 0
    %1610 = vmatpush1.bf16.msra.mxu0 0
    %1611 = vmatprep.subr.bf16.mxu0 0
    %1612 = vmatpush1.bf16.msra.mxu0 0
    %1613 = vmatprep.subr.bf16.mxu0 0
    %1614 = vmatpush1.bf16.msra.mxu0 0
    %1615 = vmatprep.subr.bf16.mxu0 0
    %1616 = vmatpush1.bf16.msra.mxu0 0
    %1617 = vmatprep.subr.bf16.mxu0 0
    %1618 = vmatpush1.bf16.msra.mxu0 0
    %1619 = vmatprep.subr.bf16.mxu0 0
    %1620 = vmatpush1.bf16.msra.mxu0 0
    %1621 = vmatprep.subr.bf16.mxu0 0
    %1622 = vmatpush1.bf16.msra.mxu0 0
    %1623 = vmatprep.mubr.bf16.mxu0 0
    %1624 = vmatmul.mubr.bf16.gmra.mrb[0].mxu0 %v1589
    %v1625 = vpop.f32.mrb[0].mxu0
    %v1626 = vadd.f32 0.0, %v1625
    %v1627 = vpop.f32.mrb[0].mxu0
    %v1628 = vpop.f32.mrb[0].mxu0
    %v1629 = vpop.f32.mrb[0].mxu0
    %1630 = vdwg.mxu0
    %v1631 = vadd.f32 %v1583, %v1626
    %v1632 = vxor.u32 %v1631, 2147483648
    %v1633 = vmul.f32 %v1632, 1.442695
    %v1634 = vpow.pop %v1633
    %v1635 = vadd.f32 %v1634, 1.0
    %v1636 = vrcp.pop %v1635
    %v1637 = vmul.f32 1.0, %v1636
    %v1638 = vtanh.pop %v1631
    %v1639 = vmul.f32 %v1637, %v1575
    %1641 = vrot.lane.b32.xlu0 %v1638, 64
    %v1642 = vpop.permute.xlu0 %1641
    %v1644 = vmul.f32 %v1637, %v1642
    %1646 = vrot.lane.b32.xlu0 %v1644, 32
    %v1647 = vpop.permute.xlu0 %1646
    %v1649 = vadd.f32 %v1639, %v1647
    %v1650 = vtanh.pop %v1649
    %1652 = vrot.lane.b32.xlu0 %v1650, 64
    %v1653 = vpop.permute.xlu0 %1652
    %v1655 = vmul.f32 %v1637, %v1653
    %v1656 = vld [vmem:[%s841] sm:$0xf]
    %v1657 = vunpack.c.l.bf16 %v1656
    %v1658 = vpack.c.bf16 %v1655, %v1655
    %1660 = vrot.lane.b32.xlu0 %v1658, 32
    %v1661 = vpop.permute.xlu0 %1660
    %v1663 = vsel %vm269, %v1661, 0
    %1665 = vmatprep.subr.bf16.mxu0 0
    %1666 = vmatpush1.bf16.msra.mxu0 %v1210
    %1667 = vmatprep.subr.bf16.mxu0 0
    %1668 = vmatpush1.bf16.msra.mxu0 %v1211
    %1669 = vmatprep.subr.bf16.mxu0 0
    %1670 = vmatpush1.bf16.msra.mxu0 0
    %1671 = vmatprep.subr.bf16.mxu0 0
    %1672 = vmatpush1.bf16.msra.mxu0 0
    %1673 = vmatprep.subr.bf16.mxu0 0
    %1674 = vmatpush1.bf16.msra.mxu0 0
    %1675 = vmatprep.subr.bf16.mxu0 0
    %1676 = vmatpush1.bf16.msra.mxu0 0
    %1677 = vmatprep.subr.bf16.mxu0 0
    %1678 = vmatpush1.bf16.msra.mxu0 0
    %1679 = vmatprep.subr.bf16.mxu0 0
    %1680 = vmatpush1.bf16.msra.mxu0 0
    %1681 = vmatprep.subr.bf16.mxu0 0
    %1682 = vmatpush1.bf16.msra.mxu0 0
    %1683 = vmatprep.subr.bf16.mxu0 0
    %1684 = vmatpush1.bf16.msra.mxu0 0
    %1685 = vmatprep.subr.bf16.mxu0 0
    %1686 = vmatpush1.bf16.msra.mxu0 0
    %1687 = vmatprep.subr.bf16.mxu0 0
    %1688 = vmatpush1.bf16.msra.mxu0 0
    %1689 = vmatprep.subr.bf16.mxu0 0
    %1690 = vmatpush1.bf16.msra.mxu0 0
    %1691 = vmatprep.subr.bf16.mxu0 0
    %1692 = vmatpush1.bf16.msra.mxu0 0
    %1693 = vmatprep.subr.bf16.mxu0 0
    %1694 = vmatpush1.bf16.msra.mxu0 0
    %1695 = vmatprep.subr.bf16.mxu0 0
    %1696 = vmatpush1.bf16.msra.mxu0 0
    %1697 = vmatprep.mubr.bf16.mxu0 0
    %1698 = vmatmul.mubr.bf16.gmra.mrb[0].mxu0 %v1663
    %v1699 = vpop.f32.mrb[0].mxu0
    %v1700 = vadd.f32 0.0, %v1699
    %v1701 = vpop.f32.mrb[0].mxu0
    %v1702 = vpop.f32.mrb[0].mxu0
    %v1703 = vpop.f32.mrb[0].mxu0
    %1704 = vdwg.mxu0
    %v1705 = vadd.f32 %v1657, %v1700
    %v1706 = vxor.u32 %v1705, 2147483648
    %v1707 = vmul.f32 %v1706, 1.442695
    %v1708 = vpow.pop %v1707
    %v1709 = vadd.f32 %v1708, 1.0
    %v1710 = vrcp.pop %v1709
    %v1711 = vmul.f32 1.0, %v1710
    %v1712 = vtanh.pop %v1705
    %v1713 = vmul.f32 %v1711, %v1649
    %1715 = vrot.lane.b32.xlu0 %v1712, 64
    %v1716 = vpop.permute.xlu0 %1715
    %v1718 = vmul.f32 %v1711, %v1716
    %1720 = vrot.lane.b32.xlu0 %v1718, 32
    %v1721 = vpop.permute.xlu0 %1720
    %v1723 = vadd.f32 %v1713, %v1721
    %v1724 = vtanh.pop %v1723
    %1726 = vrot.lane.b32.xlu0 %v1724, 64
    %v1727 = vpop.permute.xlu0 %1726
    %v1729 = vmul.f32 %v1711, %v1727
    %v1730 = vld [vmem:[%s939] sm:$0xf]
    %v1731 = vunpack.c.l.bf16 %v1730
    %v1732 = vpack.c.bf16 %v1729, %v1729
    %1734 = vrot.lane.b32.xlu0 %v1732, 32
    %v1735 = vpop.permute.xlu0 %1734
    %v1737 = vsel %vm269, %v1735, 0
    %1739 = vmatprep.subr.bf16.mxu0 0
    %1740 = vmatpush1.bf16.msra.mxu0 %v1210
    %1741 = vmatprep.subr.bf16.mxu0 0
    %1742 = vmatpush1.bf16.msra.mxu0 %v1211
    %1743 = vmatprep.subr.bf16.mxu0 0
    %1744 = vmatpush1.bf16.msra.mxu0 0
    %1745 = vmatprep.subr.bf16.mxu0 0
    %1746 = vmatpush1.bf16.msra.mxu0 0
    %1747 = vmatprep.subr.bf16.mxu0 0
    %1748 = vmatpush1.bf16.msra.mxu0 0
    %1749 = vmatprep.subr.bf16.mxu0 0
    %1750 = vmatpush1.bf16.msra.mxu0 0
    %1751 = vmatprep.subr.bf16.mxu0 0
    %1752 = vmatpush1.bf16.msra.mxu0 0
    %1753 = vmatprep.subr.bf16.mxu0 0
    %1754 = vmatpush1.bf16.msra.mxu0 0
    %1755 = vmatprep.subr.bf16.mxu0 0
    %1756 = vmatpush1.bf16.msra.mxu0 0
    %1757 = vmatprep.subr.bf16.mxu0 0
    %1758 = vmatpush1.bf16.msra.mxu0 0
    %1759 = vmatprep.subr.bf16.mxu0 0
    %1760 = vmatpush1.bf16.msra.mxu0 0
    %1761 = vmatprep.subr.bf16.mxu0 0
    %1762 = vmatpush1.bf16.msra.mxu0 0
    %1763 = vmatprep.subr.bf16.mxu0 0
    %1764 = vmatpush1.bf16.msra.mxu0 0
    %1765 = vmatprep.subr.bf16.mxu0 0
    %1766 = vmatpush1.bf16.msra.mxu0 0
    %1767 = vmatprep.subr.bf16.mxu0 0
    %1768 = vmatpush1.bf16.msra.mxu0 0
    %1769 = vmatprep.subr.bf16.mxu0 0
    %1770 = vmatpush1.bf16.msra.mxu0 0
    %1771 = vmatprep.mubr.bf16.mxu0 0
    %1772 = vmatmul.mubr.bf16.gmra.mrb[0].mxu0 %v1737
    %v1773 = vpop.f32.mrb[0].mxu0
    %v1774 = vadd.f32 0.0, %v1773
    %v1775 = vpop.f32.mrb[0].mxu0
    %v1776 = vpop.f32.mrb[0].mxu0
    %v1777 = vpop.f32.mrb[0].mxu0
    %1778 = vdwg.mxu0
    %v1779 = vadd.f32 %v1731, %v1774
    %v1780 = vxor.u32 %v1779, 2147483648
    %v1781 = vmul.f32 %v1780, 1.442695
    %v1782 = vpow.pop %v1781
    %v1783 = vadd.f32 %v1782, 1.0
    %v1784 = vrcp.pop %v1783
    %v1785 = vmul.f32 1.0, %v1784
    %v1786 = vtanh.pop %v1779
    %v1787 = vmul.f32 %v1785, %v1723
    %1789 = vrot.lane.b32.xlu0 %v1786, 64
    %v1790 = vpop.permute.xlu0 %1789
    %v1792 = vmul.f32 %v1785, %v1790
    %1794 = vrot.lane.b32.xlu0 %v1792, 32
    %v1795 = vpop.permute.xlu0 %1794
    %v1797 = vadd.f32 %v1787, %v1795
    %v1798 = vtanh.pop %v1797
    %1800 = vrot.lane.b32.xlu0 %v1798, 64
    %v1801 = vpop.permute.xlu0 %1800
    %v1803 = vmul.f32 %v1785, %v1801
    %1805 = vrot.lane.b32.xlu0 %v1803, 32
    %v1806 = vpop.permute.xlu0 %1805
    %1808 = vst.msk [vmem:[%s1191] sm:$0xff] %vm269, %v1806
    %1810 = vrot.lane.b32.xlu0 %v1797, 96
    %v1811 = vpop.permute.xlu0 %1810
    %1813 = vst.msk [vmem:[%s1193] sm:$0xff] %vm269, %v1811
    // Predicated region
    $region62: #{tpu_custom_call.1} parent=1 // pred_check
      %p1814 = pneg %p102
    $region63: #{tpu_custom_call.1} parent=1 // pred_check_branch
      %1816 = sbr.rel (%p1814) target = $region65
    $region64: #{tpu_custom_call.1} parent=1 // pred_region
      %v1817 = vld [vmem:[%s1191] sm:$0xff]
      %v1818 = vpack.c.bf16 %v1817, %v1817
      %v1819 = vld [vmem:[#allocation14] sm:$0xf]
      %v1820 = vld [vmem:[#allocation14 + $0x4] sm:$0xf]
      %v1821 = vld [vmem:[#allocation14 + $0x8] sm:$0xf]
      %v1822 = vld [vmem:[#allocation14 + $0xc] sm:$0xf]
      %v1823 = vld [vmem:[%s8] sm:$0x1]
      %v1825 = vlaneseq
      %v1826 = vshrl.u32 %v1825, 7
      %v1827 = vsub.s32 0, %v1826
      %v1828 = vrot.slane %v1823, %v1827
      %v1834 = vunpack.c.l.b16 %v1819
      %v1835 = vunpack.c.l.b16 %v1820
      %v1836 = vunpack.c.l.b16 %v1821
      %v1837 = vunpack.c.l.b16 %v1822
      %v1838 = vpack.c.b16 %v1835, %v1834
      %v1839 = vpack.c.b16 %v1837, %v1836
      %v1843 = vsel %vm269, %v1818, 0
      %1845 = vmatprep.subr.bf16.mxu0 0
      %1846 = vmatpush1.bf16.msra.mxu0 %v1838
      %1847 = vmatprep.subr.bf16.mxu0 0
      %1848 = vmatpush1.bf16.msra.mxu0 %v1839
      %1849 = vmatprep.subr.bf16.mxu0 0
      %1850 = vmatpush1.bf16.msra.mxu0 0
      %1851 = vmatprep.subr.bf16.mxu0 0
      %1852 = vmatpush1.bf16.msra.mxu0 0
      %1853 = vmatprep.subr.bf16.mxu0 0
      %1854 = vmatpush1.bf16.msra.mxu0 0
      %1855 = vmatprep.subr.bf16.mxu0 0
      %1856 = vmatpush1.bf16.msra.mxu0 0
      %1857 = vmatprep.subr.bf16.mxu0 0
      %1858 = vmatpush1.bf16.msra.mxu0 0
      %1859 = vmatprep.subr.bf16.mxu0 0
      %1860 = vmatpush1.bf16.msra.mxu0 0
      %1861 = vmatprep.subr.bf16.mxu0 0
      %1862 = vmatpush1.bf16.msra.mxu0 0
      %1863 = vmatprep.subr.bf16.mxu0 0
      %1864 = vmatpush1.bf16.msra.mxu0 0
      %1865 = vmatprep.subr.bf16.mxu0 0
      %1866 = vmatpush1.bf16.msra.mxu0 0
      %1867 = vmatprep.subr.bf16.mxu0 0
      %1868 = vmatpush1.bf16.msra.mxu0 0
      %1869 = vmatprep.subr.bf16.mxu0 0
      %1870 = vmatpush1.bf16.msra.mxu0 0
      %1871 = vmatprep.subr.bf16.mxu0 0
      %1872 = vmatpush1.bf16.msra.mxu0 0
      %1873 = vmatprep.subr.bf16.mxu0 0
      %1874 = vmatpush1.bf16.msra.mxu0 0
      %1875 = vmatprep.subr.bf16.mxu0 0
      %1876 = vmatpush1.bf16.msra.mxu0 0
      %1877 = vmatprep.mubr.bf16.mxu0 0
      %1878 = vmatmul.mubr.bf16.gmra.mrb[0].mxu0 %v1843
      %v1879 = vpop.f32.mrb[0].mxu0
      %v1880 = vadd.f32 %v1828, %v1879
      %v1881 = vpop.f32.mrb[0].mxu0
      %v1882 = vpop.f32.mrb[0].mxu0
      %v1883 = vpop.f32.mrb[0].mxu0
      %1884 = vdwg.mxu0
      %1885 = vst [vmem:[#allocation15] sm:$0xff] %v1880
    $region65: #{tpu_custom_call.1} parent=1 // pred_fallthru
      _
    // Predicated region
    $region66: #{tpu_custom_call.1} parent=1 // pred_check
      _
    $region67: #{tpu_custom_call.1} parent=1 // pred_check_branch
      %1887 = sbr.rel (0) target = $region69
    $region68: #{tpu_custom_call.1} parent=1 // pred_region
      %s1889 = ssub.s32 128, 128
      %1890 = vsyncadd [#allocation8], %s1889
      %s1892 = sshll.u32 [#allocation15], 4
      %s1893 = int_to_ptr.vmem [resolvable:$true] %s1892
      %1895 = dma.vmem_to_hbm [thread:$0]  %s1893, 128, %s9, [#allocation8]
    $region69: #{tpu_custom_call.1} parent=1 // pred_fallthru
      _
    // Predicated region
    $region70: #{tpu_custom_call.1} parent=1 // pred_check
      _
    $region71: #{tpu_custom_call.1} parent=1 // pred_check_branch
      %1897 = sbr.rel (0) target = $region73
    $region72: #{tpu_custom_call.1} parent=1 // pred_region
      %1898 = dma.done [#allocation8], 128
    $region73: #{tpu_custom_call.1} parent=1 // pred_fallthru
      _
    %1899 = vsyncpa [#allocation7], 1
    %1900 = vsyncpa [#allocation10], 1
    %1901 = vsyncpa [#allocation13], 1
    %1902 = vsyncpa [#allocation8], 1

</llo_original>
